<compile_context>
chip_gen: v7x
topology: tpu7x:2x2x1
jax: 0.10.0
libtpu: 0.0.40
codegen_flags: <defaults>
</compile_context>

<pallas_src>
from functools import partial

import jax
import jax.numpy as jnp
from jax.experimental import pallas as pl
from jax.experimental.pallas import tpu as pltpu


def _gattention_kernel(x_ref, k_ref, v_ref, wq_ref, wp_ref, bp_ref, o_ref,
                       *, num_heads, head_dim, block_b):
    # x_ref : (Bt, N, C)  bf16          k_ref/v_ref : (Bt, H, M, Dh) bf16
    # wq_ref: (H, C, Dh)  bf16 (scale folded)   wp_ref: (H, Dh, C) bf16
    # bp_ref: (1, C) f32                o_ref : (Bt, N, C) f32
    H, Dh, Bt = num_heads, head_dim, block_b
    N = x_ref.shape[1]
    C = x_ref.shape[2]
    M = k_ref.shape[2]
    BH = Bt * H

    x = x_ref[...]                                                     # (Bt, N, C) bf16

    # ---- q projection, directly in head-major layout (one batched dot) ----
    # Broadcasts only touch major dims (cheap, no relayout of the (8,128) tile).
    xb = jnp.broadcast_to(x[:, None], (Bt, H, N, C)).reshape(BH, N, C)          # (BH, N, C)
    wq = jnp.broadcast_to(wq_ref[...][None], (Bt, H, C, Dh)).reshape(BH, C, Dh)  # (BH, C, Dh)
    q = jnp.einsum('bnc,bcd->bnd', xb, wq,
                   preferred_element_type=jnp.float32)                 # (BH, N, Dh) f32

    kf = k_ref[...].reshape(BH, M, Dh)                                  # (BH, M, Dh) bf16
    vf = v_ref[...].reshape(BH, M, Dh)                                  # (BH, M, Dh) bf16

    # ---- scores: contract Dh (last axis of both) -> no transpose materialized
    s = jnp.einsum('bnd,bmd->bnm', q.astype(jnp.bfloat16), kf,
                   preferred_element_type=jnp.float32)                 # (BH, N, M) f32

    # ---- numerically stable softmax, all in f32 (v5e-safe) ----
    s = s - jnp.max(s, axis=-1, keepdims=True)
    p = jnp.exp(s)
    p = p * pl.reciprocal(jnp.sum(p, axis=-1, keepdims=True), approx=True)
    # attn_drop is Dropout(0.0) -> identity

    # ---- attn @ v (one batched dot) ----
    ctx = jnp.einsum('bnm,bmd->bnd', p.astype(jnp.bfloat16), vf,
                     preferred_element_type=jnp.float32)               # (BH, N, Dh) f32

    # ---- output projection: head-batched matmul + reduce over heads ----
    # sum_h ctx_h @ Wp_h  ==  concat_h(ctx_h) @ Wp   (block decomposition)
    wp = jnp.broadcast_to(wp_ref[...][None], (Bt, H, Dh, C)).reshape(BH, Dh, C)
    outh = jnp.einsum('bnd,bdc->bnc', ctx.astype(jnp.bfloat16), wp,
                      preferred_element_type=jnp.float32)              # (BH, N, C) f32
    out = outh.reshape(Bt, H, N, C).sum(axis=1) + bp_ref[...]          # (Bt, N, C) f32
    # proj_drop is Dropout(0.0) -> identity
    o_ref[...] = out.astype(o_ref.dtype)


def gattention_pallas(x, k, v, wq_t, wp_t, bp, *, num_heads, scale, block_b=None):
    B, N, C = x.shape
    H = num_heads
    Dh = C // H
    M = k.shape[2]
    assert k.shape == (B, H, M, Dh) and v.shape == (B, H, M, Dh)
    if block_b is None:
        block_b = B
    assert B % block_b == 0

    # ---- offline layout / scale plumbing (runs once, outside the kernel) ----
    # Fold the softmax scale into the q weights and split both projections per
    # head; cast all MXU operands to bf16 (f32 accumulation inside the kernel).
    wq_heads = (wq_t * scale).reshape(C, H, Dh).transpose(1, 0, 2).astype(jnp.bfloat16)  # (H, C, Dh)
    wp_heads = wp_t.reshape(H, Dh, C).astype(jnp.bfloat16)                               # (H, Dh, C)
    x_bf = x.astype(jnp.bfloat16)
    k_bf = k.astype(jnp.bfloat16)
    v_bf = v.astype(jnp.bfloat16)
    bp_f32 = bp.astype(jnp.float32)

    kernel = partial(_gattention_kernel, num_heads=H, head_dim=Dh, block_b=block_b)

    # Advisory cost estimate so XLA schedules surrounding ops sensibly.
    flops = 4 * B * N * C * C + 4 * B * H * N * M * Dh
    transcendentals = B * H * N * M
    bytes_accessed = (x_bf.size * 2 + k_bf.size * 2 + v_bf.size * 2 +
                      wq_heads.size * 2 + wp_heads.size * 2 +
                      bp_f32.size * 4 + B * N * C * 4)

    return pl.pallas_call(
        kernel,
        out_shape=jax.ShapeDtypeStruct((B, N, C), x.dtype),
        grid_spec=pltpu.PrefetchScalarGridSpec(
            num_scalar_prefetch=0,
            grid=(B // block_b,),
            in_specs=[
                pl.BlockSpec((block_b, N, C), lambda b: (b, 0, 0)),          # x (bf16)
                pl.BlockSpec((block_b, H, M, Dh), lambda b: (b, 0, 0, 0)),   # k (bf16)
                pl.BlockSpec((block_b, H, M, Dh), lambda b: (b, 0, 0, 0)),   # v (bf16)
                pl.BlockSpec((H, C, Dh), lambda b: (0, 0, 0)),               # Wq per head (scaled)
                pl.BlockSpec((H, Dh, C), lambda b: (0, 0, 0)),               # Wproj per head
                pl.BlockSpec((1, C), lambda b: (0, 0)),                      # proj bias (f32)
            ],
            out_specs=pl.BlockSpec((block_b, N, C), lambda b: (b, 0, 0)),
        ),
        compiler_params=pltpu.CompilerParams(
            dimension_semantics=("parallel",)),
        cost_estimate=pl.CostEstimate(flops=flops,
                                      transcendentals=transcendentals,
                                      bytes_accessed=bytes_accessed),
    )(x_bf, k_bf, v_bf, wq_heads, wp_heads, bp_f32)


def gattention_ref(x, k, v, wq_t, wp_t, bp, *, num_heads, scale):
    """Pure-JAX f32 reference mirroring the PyTorch forward."""
    B, N, C = x.shape
    Dh = C // num_heads
    q = (x @ wq_t).reshape(B, N, num_heads, Dh).transpose(0, 2, 1, 3)  # (B,H,N,Dh)
    attn = jnp.einsum("bhnd,bhmd->bhnm", q, k) * scale
    attn = jax.nn.softmax(attn, axis=-1)
    ctx = jnp.einsum("bhnm,bhmd->bhnd", attn, v)                       # (B,H,N,Dh)
    ctx = ctx.transpose(0, 2, 1, 3).reshape(B, N, C)
    return ctx @ wp_t + bp[0]


if __name__ == "__main__":
    # Small shapes consistent with the module's forward.
    B, N, C = 2, 8, 32
    num_heads = 4
    Dh = C // num_heads
    M = 8                       # key/value sequence length
    scale = Dh ** -0.5          # qk_scale defaults to head_dim ** -0.5

    key = jax.random.PRNGKey(0)
    kx, kk, kv, kw1, kw2, kb = jax.random.split(key, 6)

    x = jax.random.normal(kx, (B, N, C), dtype=jnp.float32)
    k = jax.random.normal(kk, (B, num_heads, M, Dh), dtype=jnp.float32)
    v = jax.random.normal(kv, (B, num_heads, M, Dh), dtype=jnp.float32)

    # Deterministic params (PyTorch Linear(dim, dim)): qkv has no bias, proj has
    # bias. Stored pre-transposed for "x @ W" use.
    wq_t = 0.05 * jax.random.normal(kw1, (C, C), dtype=jnp.float32)
    wp_t = 0.05 * jax.random.normal(kw2, (C, C), dtype=jnp.float32)
    bp = 0.01 * jax.random.normal(kb, (1, C), dtype=jnp.float32)

    # Whole (small) batch per grid step so both projections see B*N rows.
    out = gattention_pallas(x, k, v, wq_t, wp_t, bp,
                            num_heads=num_heads, scale=scale, block_b=B)
    out = jax.block_until_ready(out)

    ref = gattention_ref(x, k, v, wq_t, wp_t, bp,
                         num_heads=num_heads, scale=scale)
    assert out.shape == (B, N, C)
    max_err = float(jnp.max(jnp.abs(out - ref)))
    # bf16 MXU operands (f32 accumulation) -> compare with a bf16-level tolerance.
    assert jnp.allclose(out, ref, atol=3e-2, rtol=3e-2), \
        f"mismatch vs reference (max abs err {max_err})"

    print("KERNEL_OK")
</pallas_src>

<mosaic_0001>
module attributes {stable_mosaic.version = 11 : i64} {
  func.func @_gattention_kernel(%arg0: i32, %arg1: memref<2x8x32xbf16, #tpu.memory_space<vmem>>, %arg2: memref<2x4x8x8xbf16, #tpu.memory_space<vmem>>, %arg3: memref<2x4x8x8xbf16, #tpu.memory_space<vmem>>, %arg4: memref<4x32x8xbf16, #tpu.memory_space<vmem>>, %arg5: memref<4x8x32xbf16, #tpu.memory_space<vmem>>, %arg6: memref<1x32xf32, #tpu.memory_space<vmem>>, %arg7: memref<2x8x32xf32, #tpu.memory_space<vmem>>) attributes {dimension_semantics = [#tpu.dimension_semantics<parallel>], iteration_bounds = array<i64: 1>, scalar_prefetch = 0 : i64, scratch_operands = 0 : i64, tpu.core_type = #tpu.core_type<tc>, window_params = [{transform_indices = @transform_0, window_bounds = array<i64: 2, 8, 32>}, {transform_indices = @transform_1, window_bounds = array<i64: 2, 4, 8, 8>}, {transform_indices = @transform_2, window_bounds = array<i64: 2, 4, 8, 8>}, {pipeline_mode = #tpu.pipeline_mode<synchronous>, transform_indices = @transform_3, window_bounds = array<i64: 4, 32, 8>}, {pipeline_mode = #tpu.pipeline_mode<synchronous>, transform_indices = @transform_4, window_bounds = array<i64: 4, 8, 32>}, {pipeline_mode = #tpu.pipeline_mode<synchronous>, transform_indices = @transform_5, window_bounds = array<i64: 1, 32>}, {transform_indices = @transform_6, window_bounds = array<i64: 2, 8, 32>}]} {
    %c0 = arith.constant 0 : index
    %c0_0 = arith.constant 0 : index
    %c0_1 = arith.constant 0 : index
    %0 = vector.load %arg1[%c0, %c0_0, %c0_1] : memref<2x8x32xbf16, #tpu.memory_space<vmem>>, vector<2x8x32xbf16>
    %1 = vector.shape_cast %0 : vector<2x8x32xbf16> to vector<2x1x8x32xbf16>
    %2 = vector.shape_cast %1 : vector<2x1x8x32xbf16> to vector<2x1x8x32xbf16>
    %3 = vector.broadcast %2 : vector<2x1x8x32xbf16> to vector<2x4x8x32xbf16>
    %4 = vector.shape_cast %3 : vector<2x4x8x32xbf16> to vector<8x8x32xbf16>
    %c0_2 = arith.constant 0 : index
    %c0_3 = arith.constant 0 : index
    %c0_4 = arith.constant 0 : index
    %5 = vector.load %arg4[%c0_2, %c0_3, %c0_4] : memref<4x32x8xbf16, #tpu.memory_space<vmem>>, vector<4x32x8xbf16>
    %6 = vector.shape_cast %5 : vector<4x32x8xbf16> to vector<1x4x32x8xbf16>
    %7 = vector.shape_cast %6 : vector<1x4x32x8xbf16> to vector<1x4x32x8xbf16>
    %8 = vector.broadcast %7 : vector<1x4x32x8xbf16> to vector<2x4x32x8xbf16>
    %9 = vector.shape_cast %8 : vector<2x4x32x8xbf16> to vector<8x32x8xbf16>
    "tpu.trace_start"() <{level = 10 : i32, message = "bnc,bcd->bnd"}> : () -> ()
    %cst = arith.constant dense<0.000000e+00> : vector<8x8x8xf32>
    %10 = tpu.matmul %4, %9, %cst {dimension_numbers = #tpu.dot_dimension_numbers<[2], [1], [1], [2], [0, 0, 0, 1, 1, 2], [0], [0]>} : vector<8x8x32xbf16>, vector<8x32x8xbf16>, vector<8x8x8xf32> -> vector<8x8x8xf32>
    "tpu.trace_stop"() : () -> ()
    %c0_5 = arith.constant 0 : index
    %c0_6 = arith.constant 0 : index
    %c0_7 = arith.constant 0 : index
    %c0_8 = arith.constant 0 : index
    %11 = vector.load %arg2[%c0_5, %c0_6, %c0_7, %c0_8] : memref<2x4x8x8xbf16, #tpu.memory_space<vmem>>, vector<2x4x8x8xbf16>
    %12 = vector.shape_cast %11 : vector<2x4x8x8xbf16> to vector<8x8x8xbf16>
    %c0_9 = arith.constant 0 : index
    %c0_10 = arith.constant 0 : index
    %c0_11 = arith.constant 0 : index
    %c0_12 = arith.constant 0 : index
    %13 = vector.load %arg3[%c0_9, %c0_10, %c0_11, %c0_12] : memref<2x4x8x8xbf16, #tpu.memory_space<vmem>>, vector<2x4x8x8xbf16>
    %14 = vector.shape_cast %13 : vector<2x4x8x8xbf16> to vector<8x8x8xbf16>
    %15 = arith.truncf %10 : vector<8x8x8xf32> to vector<8x8x8xbf16>
    "tpu.trace_start"() <{level = 10 : i32, message = "bnd,bmd->bnm"}> : () -> ()
    %cst_13 = arith.constant dense<0.000000e+00> : vector<8x8x8xf32>
    %16 = tpu.matmul %15, %12, %cst_13 {dimension_numbers = #tpu.dot_dimension_numbers<[2], [2], [1], [1], [0, 0, 0, 1, 1, 1], [0], [0]>} : vector<8x8x8xbf16>, vector<8x8x8xbf16>, vector<8x8x8xf32> -> vector<8x8x8xf32>
    "tpu.trace_stop"() : () -> ()
    %cst_14 = arith.constant dense<0xFF800000> : vector<8x8xf32>
    %17 = vector.multi_reduction <maximumf>, %16, %cst_14 [2] : vector<8x8x8xf32> to vector<8x8xf32>
    %18 = vector.shape_cast %17 : vector<8x8xf32> to vector<8x8x1xf32>
    %19 = vector.broadcast %18 : vector<8x8x1xf32> to vector<8x8x8xf32>
    %20 = arith.subf %16, %19 : vector<8x8x8xf32>
    %21 = math.exp %20 : vector<8x8x8xf32>
    %cst_15 = arith.constant dense<0.000000e+00> : vector<8x8xf32>
    %22 = vector.multi_reduction <add>, %21, %cst_15 [2] : vector<8x8x8xf32> to vector<8x8xf32>
    %23 = vector.shape_cast %22 : vector<8x8xf32> to vector<8x8x1xf32>
    %24 = tpu.reciprocal %23 {approx = true} : vector<8x8x1xf32> -> vector<8x8x1xf32>
    %25 = vector.broadcast %24 : vector<8x8x1xf32> to vector<8x8x8xf32>
    %26 = arith.mulf %21, %25 : vector<8x8x8xf32>
    %27 = arith.truncf %26 : vector<8x8x8xf32> to vector<8x8x8xbf16>
    "tpu.trace_start"() <{level = 10 : i32, message = "bnm,bmd->bnd"}> : () -> ()
    %cst_16 = arith.constant dense<0.000000e+00> : vector<8x8x8xf32>
    %28 = tpu.matmul %27, %14, %cst_16 {dimension_numbers = #tpu.dot_dimension_numbers<[2], [1], [1], [2], [0, 0, 0, 1, 1, 2], [0], [0]>} : vector<8x8x8xbf16>, vector<8x8x8xbf16>, vector<8x8x8xf32> -> vector<8x8x8xf32>
    "tpu.trace_stop"() : () -> ()
    %c0_17 = arith.constant 0 : index
    %c0_18 = arith.constant 0 : index
    %c0_19 = arith.constant 0 : index
    %29 = vector.load %arg5[%c0_17, %c0_18, %c0_19] : memref<4x8x32xbf16, #tpu.memory_space<vmem>>, vector<4x8x32xbf16>
    %30 = vector.shape_cast %29 : vector<4x8x32xbf16> to vector<1x4x8x32xbf16>
    %31 = vector.shape_cast %30 : vector<1x4x8x32xbf16> to vector<1x4x8x32xbf16>
    %32 = vector.broadcast %31 : vector<1x4x8x32xbf16> to vector<2x4x8x32xbf16>
    %33 = vector.shape_cast %32 : vector<2x4x8x32xbf16> to vector<8x8x32xbf16>
    %34 = arith.truncf %28 : vector<8x8x8xf32> to vector<8x8x8xbf16>
    "tpu.trace_start"() <{level = 10 : i32, message = "bnd,bdc->bnc"}> : () -> ()
    %cst_20 = arith.constant dense<0.000000e+00> : vector<8x8x32xf32>
    %35 = tpu.matmul %34, %33, %cst_20 {dimension_numbers = #tpu.dot_dimension_numbers<[2], [1], [1], [2], [0, 0, 0, 1, 1, 2], [0], [0]>} : vector<8x8x8xbf16>, vector<8x8x32xbf16>, vector<8x8x32xf32> -> vector<8x8x32xf32>
    "tpu.trace_stop"() : () -> ()
    %36 = vector.shape_cast %35 : vector<8x8x32xf32> to vector<2x4x8x32xf32>
    %cst_21 = arith.constant dense<0.000000e+00> : vector<2x8x32xf32>
    %37 = vector.multi_reduction <add>, %36, %cst_21 [1] : vector<2x4x8x32xf32> to vector<2x8x32xf32>
    %c0_22 = arith.constant 0 : index
    %c0_23 = arith.constant 0 : index
    %38 = vector.load %arg6[%c0_22, %c0_23] : memref<1x32xf32, #tpu.memory_space<vmem>>, vector<1x32xf32>
    %39 = vector.shape_cast %38 : vector<1x32xf32> to vector<1x1x32xf32>
    %40 = vector.broadcast %39 : vector<1x1x32xf32> to vector<2x8x32xf32>
    %41 = arith.addf %37, %40 : vector<2x8x32xf32>
    %c0_24 = arith.constant 0 : index
    %c0_25 = arith.constant 0 : index
    %c0_26 = arith.constant 0 : index
    %42 = vector.load %arg7[%c0_24, %c0_25, %c0_26] : memref<2x8x32xf32, #tpu.memory_space<vmem>>, vector<2x8x32xf32>
    tpu.vector_store %arg7[%c0_24, %c0_25, %c0_26], %41 {strides = array<i32>} : memref<2x8x32xf32, #tpu.memory_space<vmem>>, vector<2x8x32xf32>,
    return
  }
  func.func @transform_0(%arg0: i32) -> (i32, i32, i32) {
    %c0_i32 = arith.constant 0 : i32
    %c0_i32_0 = arith.constant 0 : i32
    %c0_i32_1 = arith.constant 0 : i32
    return %arg0, %c0_i32, %c0_i32_0 : i32, i32, i32
  }
  func.func @transform_1(%arg0: i32) -> (i32, i32, i32, i32) {
    %c0_i32 = arith.constant 0 : i32
    %c0_i32_0 = arith.constant 0 : i32
    %c0_i32_1 = arith.constant 0 : i32
    %c0_i32_2 = arith.constant 0 : i32
    return %arg0, %c0_i32, %c0_i32_0, %c0_i32_1 : i32, i32, i32, i32
  }
  func.func @transform_2(%arg0: i32) -> (i32, i32, i32, i32) {
    %c0_i32 = arith.constant 0 : i32
    %c0_i32_0 = arith.constant 0 : i32
    %c0_i32_1 = arith.constant 0 : i32
    %c0_i32_2 = arith.constant 0 : i32
    return %arg0, %c0_i32, %c0_i32_0, %c0_i32_1 : i32, i32, i32, i32
  }
  func.func @transform_3(%arg0: i32) -> (i32, i32, i32) {
    %c0_i32 = arith.constant 0 : i32
    %c0_i32_0 = arith.constant 0 : i32
    %c0_i32_1 = arith.constant 0 : i32
    %c0_i32_2 = arith.constant 0 : i32
    return %c0_i32, %c0_i32_0, %c0_i32_1 : i32, i32, i32
  }
  func.func @transform_4(%arg0: i32) -> (i32, i32, i32) {
    %c0_i32 = arith.constant 0 : i32
    %c0_i32_0 = arith.constant 0 : i32
    %c0_i32_1 = arith.constant 0 : i32
    %c0_i32_2 = arith.constant 0 : i32
    return %c0_i32, %c0_i32_0, %c0_i32_1 : i32, i32, i32
  }
  func.func @transform_5(%arg0: i32) -> (i32, i32) {
    %c0_i32 = arith.constant 0 : i32
    %c0_i32_0 = arith.constant 0 : i32
    %c0_i32_1 = arith.constant 0 : i32
    return %c0_i32, %c0_i32_0 : i32, i32
  }
  func.func @transform_6(%arg0: i32) -> (i32, i32, i32) {
    %c0_i32 = arith.constant 0 : i32
    %c0_i32_0 = arith.constant 0 : i32
    %c0_i32_1 = arith.constant 0 : i32
    return %arg0, %c0_i32, %c0_i32_0 : i32, i32, i32
  }
}

</mosaic_0001>

<llo_original>
// kernel: tpu_custom_call.1
$region0: #{tpu_custom_call.1}
  #allocation0 [shape = 'u32[]', space=smem, size = 0x4, offset = 0x4, fixed_abs, tag = 'smem constant byte address 0x4 - core index']
  #allocation1 [shape = 'u32[144,128]{1,0:T(1,128)}', space=vmem, size = 0x12000, scoped, tag = 'internal scratch']
  %s0 = inlined_call_operand.hbm [shape: bf16[2,8,32], index: 0, kind: input, shape index: {}]
  %s1 = inlined_call_operand.vmem [shape: bf16[2,4,8,8], index: 1, kind: input, shape index: {}]
  %s2 = inlined_call_operand.vmem [shape: bf16[2,4,8,8], index: 2, kind: input, shape index: {}]
  %s3 = inlined_call_operand.vmem [shape: bf16[4,32,8], index: 3, kind: input, shape index: {}]
  %s4 = inlined_call_operand.vmem [shape: bf16[4,8,32], index: 4, kind: input, shape index: {}]
  %s5 = inlined_call_operand.vmem [shape: f32[1,32], index: 5, kind: input, shape index: {}]
  %s6 = inlined_call_operand.hbm [shape: f32[2,8,32], index: 6, kind: output, shape index: {}]
  %s7 = sld [smem:[#allocation0]]
  $region38: #{tpu_custom_call.1} parent=0
    _
  %s9 = ssub.s32 1, %s7
  %s10 = scalar_select 0, %s9, %s7
  $region1: #{tpu_custom_call.1} parent=0
    #allocation2 [shape = 'u8[4096]{0}', space=vmem, size = 0x1000, scoped, tag = 'input window, operand 0, single buffered']
    #allocation3 [shape = 's32[1]{0}', space=sflag, size = 0x4, scoped, tag = 'scoped memory for tpu_custom_call.1']
    #allocation4 [shape = 's32[1]{0}', space=sflag, size = 0x4, scoped, tag = 'scoped memory for tpu_custom_call.1']
    #allocation5 [shape = 'u8[8192]{0}', space=vmem, size = 0x2000, scoped, tag = 'output window, operand 0, single buffered']
    %11 = vsyncpa [#allocation3], 0
    %12 = vsyncpa [#allocation4], 0
    // Predicated region
    $region2: #{tpu_custom_call.1} parent=1 // pred_check
      _
    $region3: #{tpu_custom_call.1} parent=1 // pred_check_branch
      %14 = sbr.rel (0) target = $region5
    $region4: #{tpu_custom_call.1} parent=1 // pred_region
      %s16 = ssub.s32 128, 128
      %17 = vsyncadd [#allocation3], %s16
      %s18 = sshll.u32 [#allocation2], 4
      %s19 = int_to_ptr.vmem [resolvable:$true] %s18
      %24 = dma.hbm_to_vmem [thread:$0]  %s0, 128, %s19, [#allocation3], 64, 64, 4
    $region5: #{tpu_custom_call.1} parent=1 // pred_fallthru
      _
    // Predicated region
    $region6: #{tpu_custom_call.1} parent=1 // pred_check
      _
    $region7: #{tpu_custom_call.1} parent=1 // pred_check_branch
      %26 = sbr.rel (0) target = $region9
    $region8: #{tpu_custom_call.1} parent=1 // pred_region
      _
    $region9: #{tpu_custom_call.1} parent=1 // pred_fallthru
      _
    // Predicated region
    $region10: #{tpu_custom_call.1} parent=1 // pred_check
      _
    $region11: #{tpu_custom_call.1} parent=1 // pred_check_branch
      %28 = sbr.rel (0) target = $region13
    $region12: #{tpu_custom_call.1} parent=1 // pred_region
      _
    $region13: #{tpu_custom_call.1} parent=1 // pred_fallthru
      _
    // Predicated region
    $region14: #{tpu_custom_call.1} parent=1 // pred_check
      _
    $region15: #{tpu_custom_call.1} parent=1 // pred_check_branch
      %30 = sbr.rel (0) target = $region17
    $region16: #{tpu_custom_call.1} parent=1 // pred_region
      _
    $region17: #{tpu_custom_call.1} parent=1 // pred_fallthru
      _
    // Predicated region
    $region18: #{tpu_custom_call.1} parent=1 // pred_check
      _
    $region19: #{tpu_custom_call.1} parent=1 // pred_check_branch
      %32 = sbr.rel (0) target = $region21
    $region20: #{tpu_custom_call.1} parent=1 // pred_region
      _
    $region21: #{tpu_custom_call.1} parent=1 // pred_fallthru
      _
    // Predicated region
    $region22: #{tpu_custom_call.1} parent=1 // pred_check
      _
    $region23: #{tpu_custom_call.1} parent=1 // pred_check_branch
      %34 = sbr.rel (0) target = $region25
    $region24: #{tpu_custom_call.1} parent=1 // pred_region
      _
    $region25: #{tpu_custom_call.1} parent=1 // pred_fallthru
      _
    // Predicated region
    $region26: #{tpu_custom_call.1} parent=1 // pred_check
      _
    $region27: #{tpu_custom_call.1} parent=1 // pred_check_branch
      %36 = sbr.rel (0) target = $region29
    $region28: #{tpu_custom_call.1} parent=1 // pred_region
      %37 = dma.done [#allocation3], 128
    $region29: #{tpu_custom_call.1} parent=1 // pred_fallthru
      _
    %v39 = vld [vmem:[#allocation2] sm:$0xf]
    %v40 = vld [vmem:[#allocation2 + $0x4] sm:$0xf]
    %v41 = vld [vmem:[%s3] sm:$0xf]
    %v42 = vld [vmem:[%s3 + $0x4] sm:$0xf]
    %v43 = vld [vmem:[%s3 + $0x8] sm:$0xf]
    %v44 = vld [vmem:[%s3 + $0xc] sm:$0xf]
    %v45 = vld [vmem:[%s3 + $0x10] sm:$0xf]
    %v46 = vld [vmem:[%s3 + $0x14] sm:$0xf]
    %v47 = vld [vmem:[%s3 + $0x18] sm:$0xf]
    %v48 = vld [vmem:[%s3 + $0x1c] sm:$0xf]
    %v49 = vld [vmem:[%s3 + $0x20] sm:$0xf]
    %v50 = vld [vmem:[%s3 + $0x24] sm:$0xf]
    %v51 = vld [vmem:[%s3 + $0x28] sm:$0xf]
    %v52 = vld [vmem:[%s3 + $0x2c] sm:$0xf]
    %v53 = vld [vmem:[%s3 + $0x30] sm:$0xf]
    %v54 = vld [vmem:[%s3 + $0x34] sm:$0xf]
    %v55 = vld [vmem:[%s3 + $0x38] sm:$0xf]
    %v56 = vld [vmem:[%s3 + $0x3c] sm:$0xf]
    %v61 = vunpack.c.l.b16 %v41
    %v62 = vunpack.c.l.b16 %v42
    %v63 = vunpack.c.l.b16 %v43
    %v64 = vunpack.c.l.b16 %v44
    %v65 = vpack.c.b16 %v62, %v61
    %v66 = vpack.c.b16 %v64, %v63
    %vm69 = vcmask 261120
    %v71 = vsel %vm69, %v39, 0
    %73 = vmatprep.subr.bf16.mxu0 0
    %74 = vmatpush1.bf16.msra.mxu0 %v65
    %75 = vmatprep.subr.bf16.mxu0 0
    %76 = vmatpush1.bf16.msra.mxu0 %v66
    %77 = vmatprep.subr.bf16.mxu0 0
    %78 = vmatpush1.bf16.msra.mxu0 0
    %79 = vmatprep.subr.bf16.mxu0 0
    %80 = vmatpush1.bf16.msra.mxu0 0
    %81 = vmatprep.subr.bf16.mxu0 0
    %82 = vmatpush1.bf16.msra.mxu0 0
    %83 = vmatprep.subr.bf16.mxu0 0
    %84 = vmatpush1.bf16.msra.mxu0 0
    %85 = vmatprep.subr.bf16.mxu0 0
    %86 = vmatpush1.bf16.msra.mxu0 0
    %87 = vmatprep.subr.bf16.mxu0 0
    %88 = vmatpush1.bf16.msra.mxu0 0
    %89 = vmatprep.subr.bf16.mxu0 0
    %90 = vmatpush1.bf16.msra.mxu0 0
    %91 = vmatprep.subr.bf16.mxu0 0
    %92 = vmatpush1.bf16.msra.mxu0 0
    %93 = vmatprep.subr.bf16.mxu0 0
    %94 = vmatpush1.bf16.msra.mxu0 0
    %95 = vmatprep.subr.bf16.mxu0 0
    %96 = vmatpush1.bf16.msra.mxu0 0
    %97 = vmatprep.subr.bf16.mxu0 0
    %98 = vmatpush1.bf16.msra.mxu0 0
    %99 = vmatprep.subr.bf16.mxu0 0
    %100 = vmatpush1.bf16.msra.mxu0 0
    %101 = vmatprep.subr.bf16.mxu0 0
    %102 = vmatpush1.bf16.msra.mxu0 0
    %103 = vmatprep.subr.bf16.mxu0 0
    %104 = vmatpush1.bf16.msra.mxu0 0
    %105 = vmatprep.mubr.bf16.mxu0 0
    %106 = vmatmul.mubr.bf16.gmra.mrb[0].mxu0 %v71
    %v107 = vpop.f32.mrb[0].mxu0
    %v108 = vadd.f32 0.0, %v107
    %v109 = vpop.f32.mrb[0].mxu0
    %v110 = vpop.f32.mrb[0].mxu0
    %v111 = vpop.f32.mrb[0].mxu0
    %112 = vdwg.mxu0
    %v117 = vunpack.c.l.b16 %v45
    %v118 = vunpack.c.l.b16 %v46
    %v119 = vunpack.c.l.b16 %v47
    %v120 = vunpack.c.l.b16 %v48
    %v121 = vpack.c.b16 %v118, %v117
    %v122 = vpack.c.b16 %v120, %v119
    %125 = vmatprep.subr.bf16.mxu0 0
    %126 = vmatpush1.bf16.msra.mxu0 %v121
    %127 = vmatprep.subr.bf16.mxu0 0
    %128 = vmatpush1.bf16.msra.mxu0 %v122
    %129 = vmatprep.subr.bf16.mxu0 0
    %130 = vmatpush1.bf16.msra.mxu0 0
    %131 = vmatprep.subr.bf16.mxu0 0
    %132 = vmatpush1.bf16.msra.mxu0 0
    %133 = vmatprep.subr.bf16.mxu0 0
    %134 = vmatpush1.bf16.msra.mxu0 0
    %135 = vmatprep.subr.bf16.mxu0 0
    %136 = vmatpush1.bf16.msra.mxu0 0
    %137 = vmatprep.subr.bf16.mxu0 0
    %138 = vmatpush1.bf16.msra.mxu0 0
    %139 = vmatprep.subr.bf16.mxu0 0
    %140 = vmatpush1.bf16.msra.mxu0 0
    %141 = vmatprep.subr.bf16.mxu0 0
    %142 = vmatpush1.bf16.msra.mxu0 0
    %143 = vmatprep.subr.bf16.mxu0 0
    %144 = vmatpush1.bf16.msra.mxu0 0
    %145 = vmatprep.subr.bf16.mxu0 0
    %146 = vmatpush1.bf16.msra.mxu0 0
    %147 = vmatprep.subr.bf16.mxu0 0
    %148 = vmatpush1.bf16.msra.mxu0 0
    %149 = vmatprep.subr.bf16.mxu0 0
    %150 = vmatpush1.bf16.msra.mxu0 0
    %151 = vmatprep.subr.bf16.mxu0 0
    %152 = vmatpush1.bf16.msra.mxu0 0
    %153 = vmatprep.subr.bf16.mxu0 0
    %154 = vmatpush1.bf16.msra.mxu0 0
    %155 = vmatprep.subr.bf16.mxu0 0
    %156 = vmatpush1.bf16.msra.mxu0 0
    %157 = vmatprep.mubr.bf16.mxu0 0
    %158 = vmatmul.mubr.bf16.gmra.mrb[0].mxu0 %v71
    %v159 = vpop.f32.mrb[0].mxu0
    %v160 = vadd.f32 0.0, %v159
    %v161 = vpop.f32.mrb[0].mxu0
    %v162 = vpop.f32.mrb[0].mxu0
    %v163 = vpop.f32.mrb[0].mxu0
    %164 = vdwg.mxu0
    %v169 = vunpack.c.l.b16 %v49
    %v170 = vunpack.c.l.b16 %v50
    %v171 = vunpack.c.l.b16 %v51
    %v172 = vunpack.c.l.b16 %v52
    %v173 = vpack.c.b16 %v170, %v169
    %v174 = vpack.c.b16 %v172, %v171
    %177 = vmatprep.subr.bf16.mxu0 0
    %178 = vmatpush1.bf16.msra.mxu0 %v173
    %179 = vmatprep.subr.bf16.mxu0 0
    %180 = vmatpush1.bf16.msra.mxu0 %v174
    %181 = vmatprep.subr.bf16.mxu0 0
    %182 = vmatpush1.bf16.msra.mxu0 0
    %183 = vmatprep.subr.bf16.mxu0 0
    %184 = vmatpush1.bf16.msra.mxu0 0
    %185 = vmatprep.subr.bf16.mxu0 0
    %186 = vmatpush1.bf16.msra.mxu0 0
    %187 = vmatprep.subr.bf16.mxu0 0
    %188 = vmatpush1.bf16.msra.mxu0 0
    %189 = vmatprep.subr.bf16.mxu0 0
    %190 = vmatpush1.bf16.msra.mxu0 0
    %191 = vmatprep.subr.bf16.mxu0 0
    %192 = vmatpush1.bf16.msra.mxu0 0
    %193 = vmatprep.subr.bf16.mxu0 0
    %194 = vmatpush1.bf16.msra.mxu0 0
    %195 = vmatprep.subr.bf16.mxu0 0
    %196 = vmatpush1.bf16.msra.mxu0 0
    %197 = vmatprep.subr.bf16.mxu0 0
    %198 = vmatpush1.bf16.msra.mxu0 0
    %199 = vmatprep.subr.bf16.mxu0 0
    %200 = vmatpush1.bf16.msra.mxu0 0
    %201 = vmatprep.subr.bf16.mxu0 0
    %202 = vmatpush1.bf16.msra.mxu0 0
    %203 = vmatprep.subr.bf16.mxu0 0
    %204 = vmatpush1.bf16.msra.mxu0 0
    %205 = vmatprep.subr.bf16.mxu0 0
    %206 = vmatpush1.bf16.msra.mxu0 0
    %207 = vmatprep.subr.bf16.mxu0 0
    %208 = vmatpush1.bf16.msra.mxu0 0
    %209 = vmatprep.mubr.bf16.mxu0 0
    %210 = vmatmul.mubr.bf16.gmra.mrb[0].mxu0 %v71
    %v211 = vpop.f32.mrb[0].mxu0
    %v212 = vadd.f32 0.0, %v211
    %v213 = vpop.f32.mrb[0].mxu0
    %v214 = vpop.f32.mrb[0].mxu0
    %v215 = vpop.f32.mrb[0].mxu0
    %216 = vdwg.mxu0
    %v221 = vunpack.c.l.b16 %v53
    %v222 = vunpack.c.l.b16 %v54
    %v223 = vunpack.c.l.b16 %v55
    %v224 = vunpack.c.l.b16 %v56
    %v225 = vpack.c.b16 %v222, %v221
    %v226 = vpack.c.b16 %v224, %v223
    %229 = vmatprep.subr.bf16.mxu0 0
    %230 = vmatpush1.bf16.msra.mxu0 %v225
    %231 = vmatprep.subr.bf16.mxu0 0
    %232 = vmatpush1.bf16.msra.mxu0 %v226
    %233 = vmatprep.subr.bf16.mxu0 0
    %234 = vmatpush1.bf16.msra.mxu0 0
    %235 = vmatprep.subr.bf16.mxu0 0
    %236 = vmatpush1.bf16.msra.mxu0 0
    %237 = vmatprep.subr.bf16.mxu0 0
    %238 = vmatpush1.bf16.msra.mxu0 0
    %239 = vmatprep.subr.bf16.mxu0 0
    %240 = vmatpush1.bf16.msra.mxu0 0
    %241 = vmatprep.subr.bf16.mxu0 0
    %242 = vmatpush1.bf16.msra.mxu0 0
    %243 = vmatprep.subr.bf16.mxu0 0
    %244 = vmatpush1.bf16.msra.mxu0 0
    %245 = vmatprep.subr.bf16.mxu0 0
    %246 = vmatpush1.bf16.msra.mxu0 0
    %247 = vmatprep.subr.bf16.mxu0 0
    %248 = vmatpush1.bf16.msra.mxu0 0
    %249 = vmatprep.subr.bf16.mxu0 0
    %250 = vmatpush1.bf16.msra.mxu0 0
    %251 = vmatprep.subr.bf16.mxu0 0
    %252 = vmatpush1.bf16.msra.mxu0 0
    %253 = vmatprep.subr.bf16.mxu0 0
    %254 = vmatpush1.bf16.msra.mxu0 0
    %255 = vmatprep.subr.bf16.mxu0 0
    %256 = vmatpush1.bf16.msra.mxu0 0
    %257 = vmatprep.subr.bf16.mxu0 0
    %258 = vmatpush1.bf16.msra.mxu0 0
    %259 = vmatprep.subr.bf16.mxu0 0
    %260 = vmatpush1.bf16.msra.mxu0 0
    %261 = vmatprep.mubr.bf16.mxu0 0
    %262 = vmatmul.mubr.bf16.gmra.mrb[0].mxu0 %v71
    %v263 = vpop.f32.mrb[0].mxu0
    %v264 = vadd.f32 0.0, %v263
    %v265 = vpop.f32.mrb[0].mxu0
    %v266 = vpop.f32.mrb[0].mxu0
    %v267 = vpop.f32.mrb[0].mxu0
    %268 = vdwg.mxu0
    %v270 = vsel %vm69, %v40, 0
    %272 = vmatprep.subr.bf16.mxu0 0
    %273 = vmatpush1.bf16.msra.mxu0 %v65
    %274 = vmatprep.subr.bf16.mxu0 0
    %275 = vmatpush1.bf16.msra.mxu0 %v66
    %276 = vmatprep.subr.bf16.mxu0 0
    %277 = vmatpush1.bf16.msra.mxu0 0
    %278 = vmatprep.subr.bf16.mxu0 0
    %279 = vmatpush1.bf16.msra.mxu0 0
    %280 = vmatprep.subr.bf16.mxu0 0
    %281 = vmatpush1.bf16.msra.mxu0 0
    %282 = vmatprep.subr.bf16.mxu0 0
    %283 = vmatpush1.bf16.msra.mxu0 0
    %284 = vmatprep.subr.bf16.mxu0 0
    %285 = vmatpush1.bf16.msra.mxu0 0
    %286 = vmatprep.subr.bf16.mxu0 0
    %287 = vmatpush1.bf16.msra.mxu0 0
    %288 = vmatprep.subr.bf16.mxu0 0
    %289 = vmatpush1.bf16.msra.mxu0 0
    %290 = vmatprep.subr.bf16.mxu0 0
    %291 = vmatpush1.bf16.msra.mxu0 0
    %292 = vmatprep.subr.bf16.mxu0 0
    %293 = vmatpush1.bf16.msra.mxu0 0
    %294 = vmatprep.subr.bf16.mxu0 0
    %295 = vmatpush1.bf16.msra.mxu0 0
    %296 = vmatprep.subr.bf16.mxu0 0
    %297 = vmatpush1.bf16.msra.mxu0 0
    %298 = vmatprep.subr.bf16.mxu0 0
    %299 = vmatpush1.bf16.msra.mxu0 0
    %300 = vmatprep.subr.bf16.mxu0 0
    %301 = vmatpush1.bf16.msra.mxu0 0
    %302 = vmatprep.subr.bf16.mxu0 0
    %303 = vmatpush1.bf16.msra.mxu0 0
    %304 = vmatprep.mubr.bf16.mxu0 0
    %305 = vmatmul.mubr.bf16.gmra.mrb[0].mxu0 %v270
    %v306 = vpop.f32.mrb[0].mxu0
    %v307 = vadd.f32 0.0, %v306
    %v308 = vpop.f32.mrb[0].mxu0
    %v309 = vpop.f32.mrb[0].mxu0
    %v310 = vpop.f32.mrb[0].mxu0
    %311 = vdwg.mxu0
    %312 = vmatprep.subr.bf16.mxu0 0
    %313 = vmatpush1.bf16.msra.mxu0 %v121
    %314 = vmatprep.subr.bf16.mxu0 0
    %315 = vmatpush1.bf16.msra.mxu0 %v122
    %316 = vmatprep.subr.bf16.mxu0 0
    %317 = vmatpush1.bf16.msra.mxu0 0
    %318 = vmatprep.subr.bf16.mxu0 0
    %319 = vmatpush1.bf16.msra.mxu0 0
    %320 = vmatprep.subr.bf16.mxu0 0
    %321 = vmatpush1.bf16.msra.mxu0 0
    %322 = vmatprep.subr.bf16.mxu0 0
    %323 = vmatpush1.bf16.msra.mxu0 0
    %324 = vmatprep.subr.bf16.mxu0 0
    %325 = vmatpush1.bf16.msra.mxu0 0
    %326 = vmatprep.subr.bf16.mxu0 0
    %327 = vmatpush1.bf16.msra.mxu0 0
    %328 = vmatprep.subr.bf16.mxu0 0
    %329 = vmatpush1.bf16.msra.mxu0 0
    %330 = vmatprep.subr.bf16.mxu0 0
    %331 = vmatpush1.bf16.msra.mxu0 0
    %332 = vmatprep.subr.bf16.mxu0 0
    %333 = vmatpush1.bf16.msra.mxu0 0
    %334 = vmatprep.subr.bf16.mxu0 0
    %335 = vmatpush1.bf16.msra.mxu0 0
    %336 = vmatprep.subr.bf16.mxu0 0
    %337 = vmatpush1.bf16.msra.mxu0 0
    %338 = vmatprep.subr.bf16.mxu0 0
    %339 = vmatpush1.bf16.msra.mxu0 0
    %340 = vmatprep.subr.bf16.mxu0 0
    %341 = vmatpush1.bf16.msra.mxu0 0
    %342 = vmatprep.subr.bf16.mxu0 0
    %343 = vmatpush1.bf16.msra.mxu0 0
    %344 = vmatprep.mubr.bf16.mxu0 0
    %345 = vmatmul.mubr.bf16.gmra.mrb[0].mxu0 %v270
    %v346 = vpop.f32.mrb[0].mxu0
    %v347 = vadd.f32 0.0, %v346
    %v348 = vpop.f32.mrb[0].mxu0
    %v349 = vpop.f32.mrb[0].mxu0
    %v350 = vpop.f32.mrb[0].mxu0
    %351 = vdwg.mxu0
    %352 = vmatprep.subr.bf16.mxu0 0
    %353 = vmatpush1.bf16.msra.mxu0 %v173
    %354 = vmatprep.subr.bf16.mxu0 0
    %355 = vmatpush1.bf16.msra.mxu0 %v174
    %356 = vmatprep.subr.bf16.mxu0 0
    %357 = vmatpush1.bf16.msra.mxu0 0
    %358 = vmatprep.subr.bf16.mxu0 0
    %359 = vmatpush1.bf16.msra.mxu0 0
    %360 = vmatprep.subr.bf16.mxu0 0
    %361 = vmatpush1.bf16.msra.mxu0 0
    %362 = vmatprep.subr.bf16.mxu0 0
    %363 = vmatpush1.bf16.msra.mxu0 0
    %364 = vmatprep.subr.bf16.mxu0 0
    %365 = vmatpush1.bf16.msra.mxu0 0
    %366 = vmatprep.subr.bf16.mxu0 0
    %367 = vmatpush1.bf16.msra.mxu0 0
    %368 = vmatprep.subr.bf16.mxu0 0
    %369 = vmatpush1.bf16.msra.mxu0 0
    %370 = vmatprep.subr.bf16.mxu0 0
    %371 = vmatpush1.bf16.msra.mxu0 0
    %372 = vmatprep.subr.bf16.mxu0 0
    %373 = vmatpush1.bf16.msra.mxu0 0
    %374 = vmatprep.subr.bf16.mxu0 0
    %375 = vmatpush1.bf16.msra.mxu0 0
    %376 = vmatprep.subr.bf16.mxu0 0
    %377 = vmatpush1.bf16.msra.mxu0 0
    %378 = vmatprep.subr.bf16.mxu0 0
    %379 = vmatpush1.bf16.msra.mxu0 0
    %380 = vmatprep.subr.bf16.mxu0 0
    %381 = vmatpush1.bf16.msra.mxu0 0
    %382 = vmatprep.subr.bf16.mxu0 0
    %383 = vmatpush1.bf16.msra.mxu0 0
    %384 = vmatprep.mubr.bf16.mxu0 0
    %385 = vmatmul.mubr.bf16.gmra.mrb[0].mxu0 %v270
    %v386 = vpop.f32.mrb[0].mxu0
    %v387 = vadd.f32 0.0, %v386
    %v388 = vpop.f32.mrb[0].mxu0
    %v389 = vpop.f32.mrb[0].mxu0
    %v390 = vpop.f32.mrb[0].mxu0
    %391 = vdwg.mxu0
    %392 = vmatprep.subr.bf16.mxu0 0
    %393 = vmatpush1.bf16.msra.mxu0 %v225
    %394 = vmatprep.subr.bf16.mxu0 0
    %395 = vmatpush1.bf16.msra.mxu0 %v226
    %396 = vmatprep.subr.bf16.mxu0 0
    %397 = vmatpush1.bf16.msra.mxu0 0
    %398 = vmatprep.subr.bf16.mxu0 0
    %399 = vmatpush1.bf16.msra.mxu0 0
    %400 = vmatprep.subr.bf16.mxu0 0
    %401 = vmatpush1.bf16.msra.mxu0 0
    %402 = vmatprep.subr.bf16.mxu0 0
    %403 = vmatpush1.bf16.msra.mxu0 0
    %404 = vmatprep.subr.bf16.mxu0 0
    %405 = vmatpush1.bf16.msra.mxu0 0
    %406 = vmatprep.subr.bf16.mxu0 0
    %407 = vmatpush1.bf16.msra.mxu0 0
    %408 = vmatprep.subr.bf16.mxu0 0
    %409 = vmatpush1.bf16.msra.mxu0 0
    %410 = vmatprep.subr.bf16.mxu0 0
    %411 = vmatpush1.bf16.msra.mxu0 0
    %412 = vmatprep.subr.bf16.mxu0 0
    %413 = vmatpush1.bf16.msra.mxu0 0
    %414 = vmatprep.subr.bf16.mxu0 0
    %415 = vmatpush1.bf16.msra.mxu0 0
    %416 = vmatprep.subr.bf16.mxu0 0
    %417 = vmatpush1.bf16.msra.mxu0 0
    %418 = vmatprep.subr.bf16.mxu0 0
    %419 = vmatpush1.bf16.msra.mxu0 0
    %420 = vmatprep.subr.bf16.mxu0 0
    %421 = vmatpush1.bf16.msra.mxu0 0
    %422 = vmatprep.subr.bf16.mxu0 0
    %423 = vmatpush1.bf16.msra.mxu0 0
    %424 = vmatprep.mubr.bf16.mxu0 0
    %425 = vmatmul.mubr.bf16.gmra.mrb[0].mxu0 %v270
    %v426 = vpop.f32.mrb[0].mxu0
    %v427 = vadd.f32 0.0, %v426
    %v428 = vpop.f32.mrb[0].mxu0
    %v429 = vpop.f32.mrb[0].mxu0
    %v430 = vpop.f32.mrb[0].mxu0
    %431 = vdwg.mxu0
    %v432 = vld [vmem:[%s1] sm:$0xf]
    %v433 = vld [vmem:[%s1 + $0x4] sm:$0xf]
    %v434 = vld [vmem:[%s1 + $0x8] sm:$0xf]
    %v435 = vld [vmem:[%s1 + $0xc] sm:$0xf]
    %v436 = vld [vmem:[%s1 + $0x10] sm:$0xf]
    %v437 = vld [vmem:[%s1 + $0x14] sm:$0xf]
    %v438 = vld [vmem:[%s1 + $0x18] sm:$0xf]
    %v439 = vld [vmem:[%s1 + $0x1c] sm:$0xf]
    %v440 = vld [vmem:[%s2] sm:$0xf]
    %v441 = vld [vmem:[%s2 + $0x4] sm:$0xf]
    %v442 = vld [vmem:[%s2 + $0x8] sm:$0xf]
    %v443 = vld [vmem:[%s2 + $0xc] sm:$0xf]
    %v444 = vld [vmem:[%s2 + $0x10] sm:$0xf]
    %v445 = vld [vmem:[%s2 + $0x14] sm:$0xf]
    %v446 = vld [vmem:[%s2 + $0x18] sm:$0xf]
    %v447 = vld [vmem:[%s2 + $0x1c] sm:$0xf]
    %v448 = vpack.c.bf16 %v108, %v108
    %v449 = vpack.c.bf16 %v160, %v160
    %v450 = vpack.c.bf16 %v212, %v212
    %v451 = vpack.c.bf16 %v264, %v264
    %v452 = vpack.c.bf16 %v307, %v307
    %v453 = vpack.c.bf16 %v347, %v347
    %v454 = vpack.c.bf16 %v387, %v387
    %v455 = vpack.c.bf16 %v427, %v427
    %vm456 = vcmask 64512
    %v458 = vsel %vm456, %v448, 0
    %v461 = vsel %vm456, %v432, 0
    %463 = vmatprep.subr.bf16.mxu0 0
    %464 = vmatpush1.bf16.xpose.msra.mxu0 %v461
    %465 = vmatprep.subr.bf16.mxu0 0
    %466 = vmatpush1.bf16.xpose.msra.mxu0 0
    %467 = vmatprep.subr.bf16.mxu0 0
    %468 = vmatpush1.bf16.xpose.msra.mxu0 0
    %469 = vmatprep.subr.bf16.mxu0 0
    %470 = vmatpush1.bf16.xpose.msra.mxu0 0
    %471 = vmatprep.subr.bf16.mxu0 0
    %472 = vmatpush1.bf16.xpose.msra.mxu0 0
    %473 = vmatprep.subr.bf16.mxu0 0
    %474 = vmatpush1.bf16.xpose.msra.mxu0 0
    %475 = vmatprep.subr.bf16.mxu0 0
    %476 = vmatpush1.bf16.xpose.msra.mxu0 0
    %477 = vmatprep.subr.bf16.mxu0 0
    %478 = vmatpush1.bf16.xpose.msra.mxu0 0
    %479 = vmatprep.subr.bf16.mxu0 0
    %480 = vmatpush1.bf16.xpose.msra.mxu0 0
    %481 = vmatprep.subr.bf16.mxu0 0
    %482 = vmatpush1.bf16.xpose.msra.mxu0 0
    %483 = vmatprep.subr.bf16.mxu0 0
    %484 = vmatpush1.bf16.xpose.msra.mxu0 0
    %485 = vmatprep.subr.bf16.mxu0 0
    %486 = vmatpush1.bf16.xpose.msra.mxu0 0
    %487 = vmatprep.subr.bf16.mxu0 0
    %488 = vmatpush1.bf16.xpose.msra.mxu0 0
    %489 = vmatprep.subr.bf16.mxu0 0
    %490 = vmatpush1.bf16.xpose.msra.mxu0 0
    %491 = vmatprep.subr.bf16.mxu0 0
    %492 = vmatpush1.bf16.xpose.msra.mxu0 0
    %493 = vmatprep.subr.bf16.mxu0 0
    %494 = vmatpush1.bf16.xpose.msra.mxu0 0
    %495 = vmatprep.mubr.bf16.mxu0 0
    %496 = vmatmul.mubr.bf16.gmra.mrb[0].mxu0 %v458
    %v497 = vpop.f32.mrb[0].mxu0
    %v498 = vadd.f32 0.0, %v497
    %v499 = vpop.f32.mrb[0].mxu0
    %v500 = vpop.f32.mrb[0].mxu0
    %v501 = vpop.f32.mrb[0].mxu0
    %502 = vdwg.mxu0
    %v504 = vsel %vm456, %v449, 0
    %v507 = vsel %vm456, %v433, 0
    %509 = vmatprep.subr.bf16.mxu0 0
    %510 = vmatpush1.bf16.xpose.msra.mxu0 %v507
    %511 = vmatprep.subr.bf16.mxu0 0
    %512 = vmatpush1.bf16.xpose.msra.mxu0 0
    %513 = vmatprep.subr.bf16.mxu0 0
    %514 = vmatpush1.bf16.xpose.msra.mxu0 0
    %515 = vmatprep.subr.bf16.mxu0 0
    %516 = vmatpush1.bf16.xpose.msra.mxu0 0
    %517 = vmatprep.subr.bf16.mxu0 0
    %518 = vmatpush1.bf16.xpose.msra.mxu0 0
    %519 = vmatprep.subr.bf16.mxu0 0
    %520 = vmatpush1.bf16.xpose.msra.mxu0 0
    %521 = vmatprep.subr.bf16.mxu0 0
    %522 = vmatpush1.bf16.xpose.msra.mxu0 0
    %523 = vmatprep.subr.bf16.mxu0 0
    %524 = vmatpush1.bf16.xpose.msra.mxu0 0
    %525 = vmatprep.subr.bf16.mxu0 0
    %526 = vmatpush1.bf16.xpose.msra.mxu0 0
    %527 = vmatprep.subr.bf16.mxu0 0
    %528 = vmatpush1.bf16.xpose.msra.mxu0 0
    %529 = vmatprep.subr.bf16.mxu0 0
    %530 = vmatpush1.bf16.xpose.msra.mxu0 0
    %531 = vmatprep.subr.bf16.mxu0 0
    %532 = vmatpush1.bf16.xpose.msra.mxu0 0
    %533 = vmatprep.subr.bf16.mxu0 0
    %534 = vmatpush1.bf16.xpose.msra.mxu0 0
    %535 = vmatprep.subr.bf16.mxu0 0
    %536 = vmatpush1.bf16.xpose.msra.mxu0 0
    %537 = vmatprep.subr.bf16.mxu0 0
    %538 = vmatpush1.bf16.xpose.msra.mxu0 0
    %539 = vmatprep.subr.bf16.mxu0 0
    %540 = vmatpush1.bf16.xpose.msra.mxu0 0
    %541 = vmatprep.mubr.bf16.mxu0 0
    %542 = vmatmul.mubr.bf16.gmra.mrb[0].mxu0 %v504
    %v543 = vpop.f32.mrb[0].mxu0
    %v544 = vadd.f32 0.0, %v543
    %v545 = vpop.f32.mrb[0].mxu0
    %v546 = vpop.f32.mrb[0].mxu0
    %v547 = vpop.f32.mrb[0].mxu0
    %548 = vdwg.mxu0
    %v550 = vsel %vm456, %v450, 0
    %v553 = vsel %vm456, %v434, 0
    %555 = vmatprep.subr.bf16.mxu0 0
    %556 = vmatpush1.bf16.xpose.msra.mxu0 %v553
    %557 = vmatprep.subr.bf16.mxu0 0
    %558 = vmatpush1.bf16.xpose.msra.mxu0 0
    %559 = vmatprep.subr.bf16.mxu0 0
    %560 = vmatpush1.bf16.xpose.msra.mxu0 0
    %561 = vmatprep.subr.bf16.mxu0 0
    %562 = vmatpush1.bf16.xpose.msra.mxu0 0
    %563 = vmatprep.subr.bf16.mxu0 0
    %564 = vmatpush1.bf16.xpose.msra.mxu0 0
    %565 = vmatprep.subr.bf16.mxu0 0
    %566 = vmatpush1.bf16.xpose.msra.mxu0 0
    %567 = vmatprep.subr.bf16.mxu0 0
    %568 = vmatpush1.bf16.xpose.msra.mxu0 0
    %569 = vmatprep.subr.bf16.mxu0 0
    %570 = vmatpush1.bf16.xpose.msra.mxu0 0
    %571 = vmatprep.subr.bf16.mxu0 0
    %572 = vmatpush1.bf16.xpose.msra.mxu0 0
    %573 = vmatprep.subr.bf16.mxu0 0
    %574 = vmatpush1.bf16.xpose.msra.mxu0 0
    %575 = vmatprep.subr.bf16.mxu0 0
    %576 = vmatpush1.bf16.xpose.msra.mxu0 0
    %577 = vmatprep.subr.bf16.mxu0 0
    %578 = vmatpush1.bf16.xpose.msra.mxu0 0
    %579 = vmatprep.subr.bf16.mxu0 0
    %580 = vmatpush1.bf16.xpose.msra.mxu0 0
    %581 = vmatprep.subr.bf16.mxu0 0
    %582 = vmatpush1.bf16.xpose.msra.mxu0 0
    %583 = vmatprep.subr.bf16.mxu0 0
    %584 = vmatpush1.bf16.xpose.msra.mxu0 0
    %585 = vmatprep.subr.bf16.mxu0 0
    %586 = vmatpush1.bf16.xpose.msra.mxu0 0
    %587 = vmatprep.mubr.bf16.mxu0 0
    %588 = vmatmul.mubr.bf16.gmra.mrb[0].mxu0 %v550
    %v589 = vpop.f32.mrb[0].mxu0
    %v590 = vadd.f32 0.0, %v589
    %v591 = vpop.f32.mrb[0].mxu0
    %v592 = vpop.f32.mrb[0].mxu0
    %v593 = vpop.f32.mrb[0].mxu0
    %594 = vdwg.mxu0
    %v596 = vsel %vm456, %v451, 0
    %v599 = vsel %vm456, %v435, 0
    %601 = vmatprep.subr.bf16.mxu0 0
    %602 = vmatpush1.bf16.xpose.msra.mxu0 %v599
    %603 = vmatprep.subr.bf16.mxu0 0
    %604 = vmatpush1.bf16.xpose.msra.mxu0 0
    %605 = vmatprep.subr.bf16.mxu0 0
    %606 = vmatpush1.bf16.xpose.msra.mxu0 0
    %607 = vmatprep.subr.bf16.mxu0 0
    %608 = vmatpush1.bf16.xpose.msra.mxu0 0
    %609 = vmatprep.subr.bf16.mxu0 0
    %610 = vmatpush1.bf16.xpose.msra.mxu0 0
    %611 = vmatprep.subr.bf16.mxu0 0
    %612 = vmatpush1.bf16.xpose.msra.mxu0 0
    %613 = vmatprep.subr.bf16.mxu0 0
    %614 = vmatpush1.bf16.xpose.msra.mxu0 0
    %615 = vmatprep.subr.bf16.mxu0 0
    %616 = vmatpush1.bf16.xpose.msra.mxu0 0
    %617 = vmatprep.subr.bf16.mxu0 0
    %618 = vmatpush1.bf16.xpose.msra.mxu0 0
    %619 = vmatprep.subr.bf16.mxu0 0
    %620 = vmatpush1.bf16.xpose.msra.mxu0 0
    %621 = vmatprep.subr.bf16.mxu0 0
    %622 = vmatpush1.bf16.xpose.msra.mxu0 0
    %623 = vmatprep.subr.bf16.mxu0 0
    %624 = vmatpush1.bf16.xpose.msra.mxu0 0
    %625 = vmatprep.subr.bf16.mxu0 0
    %626 = vmatpush1.bf16.xpose.msra.mxu0 0
    %627 = vmatprep.subr.bf16.mxu0 0
    %628 = vmatpush1.bf16.xpose.msra.mxu0 0
    %629 = vmatprep.subr.bf16.mxu0 0
    %630 = vmatpush1.bf16.xpose.msra.mxu0 0
    %631 = vmatprep.subr.bf16.mxu0 0
    %632 = vmatpush1.bf16.xpose.msra.mxu0 0
    %633 = vmatprep.mubr.bf16.mxu0 0
    %634 = vmatmul.mubr.bf16.gmra.mrb[0].mxu0 %v596
    %v635 = vpop.f32.mrb[0].mxu0
    %v636 = vadd.f32 0.0, %v635
    %v637 = vpop.f32.mrb[0].mxu0
    %v638 = vpop.f32.mrb[0].mxu0
    %v639 = vpop.f32.mrb[0].mxu0
    %640 = vdwg.mxu0
    %v642 = vsel %vm456, %v452, 0
    %v645 = vsel %vm456, %v436, 0
    %647 = vmatprep.subr.bf16.mxu0 0
    %648 = vmatpush1.bf16.xpose.msra.mxu0 %v645
    %649 = vmatprep.subr.bf16.mxu0 0
    %650 = vmatpush1.bf16.xpose.msra.mxu0 0
    %651 = vmatprep.subr.bf16.mxu0 0
    %652 = vmatpush1.bf16.xpose.msra.mxu0 0
    %653 = vmatprep.subr.bf16.mxu0 0
    %654 = vmatpush1.bf16.xpose.msra.mxu0 0
    %655 = vmatprep.subr.bf16.mxu0 0
    %656 = vmatpush1.bf16.xpose.msra.mxu0 0
    %657 = vmatprep.subr.bf16.mxu0 0
    %658 = vmatpush1.bf16.xpose.msra.mxu0 0
    %659 = vmatprep.subr.bf16.mxu0 0
    %660 = vmatpush1.bf16.xpose.msra.mxu0 0
    %661 = vmatprep.subr.bf16.mxu0 0
    %662 = vmatpush1.bf16.xpose.msra.mxu0 0
    %663 = vmatprep.subr.bf16.mxu0 0
    %664 = vmatpush1.bf16.xpose.msra.mxu0 0
    %665 = vmatprep.subr.bf16.mxu0 0
    %666 = vmatpush1.bf16.xpose.msra.mxu0 0
    %667 = vmatprep.subr.bf16.mxu0 0
    %668 = vmatpush1.bf16.xpose.msra.mxu0 0
    %669 = vmatprep.subr.bf16.mxu0 0
    %670 = vmatpush1.bf16.xpose.msra.mxu0 0
    %671 = vmatprep.subr.bf16.mxu0 0
    %672 = vmatpush1.bf16.xpose.msra.mxu0 0
    %673 = vmatprep.subr.bf16.mxu0 0
    %674 = vmatpush1.bf16.xpose.msra.mxu0 0
    %675 = vmatprep.subr.bf16.mxu0 0
    %676 = vmatpush1.bf16.xpose.msra.mxu0 0
    %677 = vmatprep.subr.bf16.mxu0 0
    %678 = vmatpush1.bf16.xpose.msra.mxu0 0
    %679 = vmatprep.mubr.bf16.mxu0 0
    %680 = vmatmul.mubr.bf16.gmra.mrb[0].mxu0 %v642
    %v681 = vpop.f32.mrb[0].mxu0
    %v682 = vadd.f32 0.0, %v681
    %v683 = vpop.f32.mrb[0].mxu0
    %v684 = vpop.f32.mrb[0].mxu0
    %v685 = vpop.f32.mrb[0].mxu0
    %686 = vdwg.mxu0
    %v688 = vsel %vm456, %v453, 0
    %v691 = vsel %vm456, %v437, 0
    %693 = vmatprep.subr.bf16.mxu0 0
    %694 = vmatpush1.bf16.xpose.msra.mxu0 %v691
    %695 = vmatprep.subr.bf16.mxu0 0
    %696 = vmatpush1.bf16.xpose.msra.mxu0 0
    %697 = vmatprep.subr.bf16.mxu0 0
    %698 = vmatpush1.bf16.xpose.msra.mxu0 0
    %699 = vmatprep.subr.bf16.mxu0 0
    %700 = vmatpush1.bf16.xpose.msra.mxu0 0
    %701 = vmatprep.subr.bf16.mxu0 0
    %702 = vmatpush1.bf16.xpose.msra.mxu0 0
    %703 = vmatprep.subr.bf16.mxu0 0
    %704 = vmatpush1.bf16.xpose.msra.mxu0 0
    %705 = vmatprep.subr.bf16.mxu0 0
    %706 = vmatpush1.bf16.xpose.msra.mxu0 0
    %707 = vmatprep.subr.bf16.mxu0 0
    %708 = vmatpush1.bf16.xpose.msra.mxu0 0
    %709 = vmatprep.subr.bf16.mxu0 0
    %710 = vmatpush1.bf16.xpose.msra.mxu0 0
    %711 = vmatprep.subr.bf16.mxu0 0
    %712 = vmatpush1.bf16.xpose.msra.mxu0 0
    %713 = vmatprep.subr.bf16.mxu0 0
    %714 = vmatpush1.bf16.xpose.msra.mxu0 0
    %715 = vmatprep.subr.bf16.mxu0 0
    %716 = vmatpush1.bf16.xpose.msra.mxu0 0
    %717 = vmatprep.subr.bf16.mxu0 0
    %718 = vmatpush1.bf16.xpose.msra.mxu0 0
    %719 = vmatprep.subr.bf16.mxu0 0
    %720 = vmatpush1.bf16.xpose.msra.mxu0 0
    %721 = vmatprep.subr.bf16.mxu0 0
    %722 = vmatpush1.bf16.xpose.msra.mxu0 0
    %723 = vmatprep.subr.bf16.mxu0 0
    %724 = vmatpush1.bf16.xpose.msra.mxu0 0
    %725 = vmatprep.mubr.bf16.mxu0 0
    %726 = vmatmul.mubr.bf16.gmra.mrb[0].mxu0 %v688
    %v727 = vpop.f32.mrb[0].mxu0
    %v728 = vadd.f32 0.0, %v727
    %v729 = vpop.f32.mrb[0].mxu0
    %v730 = vpop.f32.mrb[0].mxu0
    %v731 = vpop.f32.mrb[0].mxu0
    %732 = vdwg.mxu0
    %v734 = vsel %vm456, %v454, 0
    %v737 = vsel %vm456, %v438, 0
    %739 = vmatprep.subr.bf16.mxu0 0
    %740 = vmatpush1.bf16.xpose.msra.mxu0 %v737
    %741 = vmatprep.subr.bf16.mxu0 0
    %742 = vmatpush1.bf16.xpose.msra.mxu0 0
    %743 = vmatprep.subr.bf16.mxu0 0
    %744 = vmatpush1.bf16.xpose.msra.mxu0 0
    %745 = vmatprep.subr.bf16.mxu0 0
    %746 = vmatpush1.bf16.xpose.msra.mxu0 0
    %747 = vmatprep.subr.bf16.mxu0 0
    %748 = vmatpush1.bf16.xpose.msra.mxu0 0
    %749 = vmatprep.subr.bf16.mxu0 0
    %750 = vmatpush1.bf16.xpose.msra.mxu0 0
    %751 = vmatprep.subr.bf16.mxu0 0
    %752 = vmatpush1.bf16.xpose.msra.mxu0 0
    %753 = vmatprep.subr.bf16.mxu0 0
    %754 = vmatpush1.bf16.xpose.msra.mxu0 0
    %755 = vmatprep.subr.bf16.mxu0 0
    %756 = vmatpush1.bf16.xpose.msra.mxu0 0
    %757 = vmatprep.subr.bf16.mxu0 0
    %758 = vmatpush1.bf16.xpose.msra.mxu0 0
    %759 = vmatprep.subr.bf16.mxu0 0
    %760 = vmatpush1.bf16.xpose.msra.mxu0 0
    %761 = vmatprep.subr.bf16.mxu0 0
    %762 = vmatpush1.bf16.xpose.msra.mxu0 0
    %763 = vmatprep.subr.bf16.mxu0 0
    %764 = vmatpush1.bf16.xpose.msra.mxu0 0
    %765 = vmatprep.subr.bf16.mxu0 0
    %766 = vmatpush1.bf16.xpose.msra.mxu0 0
    %767 = vmatprep.subr.bf16.mxu0 0
    %768 = vmatpush1.bf16.xpose.msra.mxu0 0
    %769 = vmatprep.subr.bf16.mxu0 0
    %770 = vmatpush1.bf16.xpose.msra.mxu0 0
    %771 = vmatprep.mubr.bf16.mxu0 0
    %772 = vmatmul.mubr.bf16.gmra.mrb[0].mxu0 %v734
    %v773 = vpop.f32.mrb[0].mxu0
    %v774 = vadd.f32 0.0, %v773
    %v775 = vpop.f32.mrb[0].mxu0
    %v776 = vpop.f32.mrb[0].mxu0
    %v777 = vpop.f32.mrb[0].mxu0
    %778 = vdwg.mxu0
    %v780 = vsel %vm456, %v455, 0
    %v783 = vsel %vm456, %v439, 0
    %785 = vmatprep.subr.bf16.mxu0 0
    %786 = vmatpush1.bf16.xpose.msra.mxu0 %v783
    %787 = vmatprep.subr.bf16.mxu0 0
    %788 = vmatpush1.bf16.xpose.msra.mxu0 0
    %789 = vmatprep.subr.bf16.mxu0 0
    %790 = vmatpush1.bf16.xpose.msra.mxu0 0
    %791 = vmatprep.subr.bf16.mxu0 0
    %792 = vmatpush1.bf16.xpose.msra.mxu0 0
    %793 = vmatprep.subr.bf16.mxu0 0
    %794 = vmatpush1.bf16.xpose.msra.mxu0 0
    %795 = vmatprep.subr.bf16.mxu0 0
    %796 = vmatpush1.bf16.xpose.msra.mxu0 0
    %797 = vmatprep.subr.bf16.mxu0 0
    %798 = vmatpush1.bf16.xpose.msra.mxu0 0
    %799 = vmatprep.subr.bf16.mxu0 0
    %800 = vmatpush1.bf16.xpose.msra.mxu0 0
    %801 = vmatprep.subr.bf16.mxu0 0
    %802 = vmatpush1.bf16.xpose.msra.mxu0 0
    %803 = vmatprep.subr.bf16.mxu0 0
    %804 = vmatpush1.bf16.xpose.msra.mxu0 0
    %805 = vmatprep.subr.bf16.mxu0 0
    %806 = vmatpush1.bf16.xpose.msra.mxu0 0
    %807 = vmatprep.subr.bf16.mxu0 0
    %808 = vmatpush1.bf16.xpose.msra.mxu0 0
    %809 = vmatprep.subr.bf16.mxu0 0
    %810 = vmatpush1.bf16.xpose.msra.mxu0 0
    %811 = vmatprep.subr.bf16.mxu0 0
    %812 = vmatpush1.bf16.xpose.msra.mxu0 0
    %813 = vmatprep.subr.bf16.mxu0 0
    %814 = vmatpush1.bf16.xpose.msra.mxu0 0
    %815 = vmatprep.subr.bf16.mxu0 0
    %816 = vmatpush1.bf16.xpose.msra.mxu0 0
    %817 = vmatprep.mubr.bf16.mxu0 0
    %818 = vmatmul.mubr.bf16.gmra.mrb[0].mxu0 %v780
    %v819 = vpop.f32.mrb[0].mxu0
    %v820 = vadd.f32 0.0, %v819
    %v821 = vpop.f32.mrb[0].mxu0
    %v822 = vpop.f32.mrb[0].mxu0
    %v823 = vpop.f32.mrb[0].mxu0
    %824 = vdwg.mxu0
    %v825 = vsel %vm456, %v498, -inf
    %826 = vmax.xlane.f32.xlu0 %v825
    %v827 = vpop.xlane.xlu0 %826
    %v828 = vsel %vm456, %v544, -inf
    %829 = vmax.xlane.f32.xlu0 %v828
    %v830 = vpop.xlane.xlu0 %829
    %v831 = vsel %vm456, %v590, -inf
    %832 = vmax.xlane.f32.xlu0 %v831
    %v833 = vpop.xlane.xlu0 %832
    %v834 = vsel %vm456, %v636, -inf
    %835 = vmax.xlane.f32.xlu0 %v834
    %v836 = vpop.xlane.xlu0 %835
    %v837 = vsel %vm456, %v682, -inf
    %838 = vmax.xlane.f32.xlu0 %v837
    %v839 = vpop.xlane.xlu0 %838
    %v840 = vsel %vm456, %v728, -inf
    %841 = vmax.xlane.f32.xlu0 %v840
    %v842 = vpop.xlane.xlu0 %841
    %v843 = vsel %vm456, %v774, -inf
    %844 = vmax.xlane.f32.xlu0 %v843
    %v845 = vpop.xlane.xlu0 %844
    %v846 = vsel %vm456, %v820, -inf
    %847 = vmax.xlane.f32.xlu0 %v846
    %v848 = vpop.xlane.xlu0 %847
    %v849 = vsub.f32 %v498, %v827
    %v850 = vsub.f32 %v544, %v830
    %v851 = vsub.f32 %v590, %v833
    %v852 = vsub.f32 %v636, %v836
    %v853 = vsub.f32 %v682, %v839
    %v854 = vsub.f32 %v728, %v842
    %v855 = vsub.f32 %v774, %v845
    %v856 = vsub.f32 %v820, %v848
    %v857 = vmul.f32 %v849, 1.442695
    %v858 = vpow.pop %v857
    %v859 = vmul.f32 %v850, 1.442695
    %v860 = vpow.pop %v859
    %v861 = vmul.f32 %v851, 1.442695
    %v862 = vpow.pop %v861
    %v863 = vmul.f32 %v852, 1.442695
    %v864 = vpow.pop %v863
    %v865 = vmul.f32 %v853, 1.442695
    %v866 = vpow.pop %v865
    %v867 = vmul.f32 %v854, 1.442695
    %v868 = vpow.pop %v867
    %v869 = vmul.f32 %v855, 1.442695
    %v870 = vpow.pop %v869
    %v871 = vmul.f32 %v856, 1.442695
    %v872 = vpow.pop %v871
    %v873 = vsel %vm456, %v858, 0.0
    %874 = vadd.xlane.f32.xlu0 %v873
    %v875 = vpop.xlane.xlu0 %874
    %v876 = vsel %vm456, %v860, 0.0
    %877 = vadd.xlane.f32.xlu0 %v876
    %v878 = vpop.xlane.xlu0 %877
    %v879 = vsel %vm456, %v862, 0.0
    %880 = vadd.xlane.f32.xlu0 %v879
    %v881 = vpop.xlane.xlu0 %880
    %v882 = vsel %vm456, %v864, 0.0
    %883 = vadd.xlane.f32.xlu0 %v882
    %v884 = vpop.xlane.xlu0 %883
    %v885 = vsel %vm456, %v866, 0.0
    %886 = vadd.xlane.f32.xlu0 %v885
    %v887 = vpop.xlane.xlu0 %886
    %v888 = vsel %vm456, %v868, 0.0
    %889 = vadd.xlane.f32.xlu0 %v888
    %v890 = vpop.xlane.xlu0 %889
    %v891 = vsel %vm456, %v870, 0.0
    %892 = vadd.xlane.f32.xlu0 %v891
    %v893 = vpop.xlane.xlu0 %892
    %v894 = vsel %vm456, %v872, 0.0
    %895 = vadd.xlane.f32.xlu0 %v894
    %v896 = vpop.xlane.xlu0 %895
    %v897 = vrcp.pop %v875
    %v898 = vrcp.pop %v878
    %v899 = vrcp.pop %v881
    %v900 = vrcp.pop %v884
    %v901 = vrcp.pop %v887
    %v902 = vrcp.pop %v890
    %v903 = vrcp.pop %v893
    %v904 = vrcp.pop %v896
    %v905 = vmul.f32 %v858, %v897
    %v906 = vmul.f32 %v860, %v898
    %v907 = vmul.f32 %v862, %v899
    %v908 = vmul.f32 %v864, %v900
    %v909 = vmul.f32 %v866, %v901
    %v910 = vmul.f32 %v868, %v902
    %v911 = vmul.f32 %v870, %v903
    %v912 = vmul.f32 %v872, %v904
    %v913 = vpack.c.bf16 %v905, %v905
    %v914 = vpack.c.bf16 %v906, %v906
    %v915 = vpack.c.bf16 %v907, %v907
    %v916 = vpack.c.bf16 %v908, %v908
    %v917 = vpack.c.bf16 %v909, %v909
    %v918 = vpack.c.bf16 %v910, %v910
    %v919 = vpack.c.bf16 %v911, %v911
    %v920 = vpack.c.bf16 %v912, %v912
    %v922 = vsel %vm456, %v913, 0
    %vm924 = vcmask 1043456
    %v926 = vsel %vm924, %v440, 0
    %928 = vmatprep.subr.bf16.mxu0 0
    %929 = vmatpush1.bf16.msra.mxu0 %v926
    %930 = vmatprep.subr.bf16.mxu0 0
    %931 = vmatpush1.bf16.msra.mxu0 0
    %932 = vmatprep.subr.bf16.mxu0 0
    %933 = vmatpush1.bf16.msra.mxu0 0
    %934 = vmatprep.subr.bf16.mxu0 0
    %935 = vmatpush1.bf16.msra.mxu0 0
    %936 = vmatprep.subr.bf16.mxu0 0
    %937 = vmatpush1.bf16.msra.mxu0 0
    %938 = vmatprep.subr.bf16.mxu0 0
    %939 = vmatpush1.bf16.msra.mxu0 0
    %940 = vmatprep.subr.bf16.mxu0 0
    %941 = vmatpush1.bf16.msra.mxu0 0
    %942 = vmatprep.subr.bf16.mxu0 0
    %943 = vmatpush1.bf16.msra.mxu0 0
    %944 = vmatprep.subr.bf16.mxu0 0
    %945 = vmatpush1.bf16.msra.mxu0 0
    %946 = vmatprep.subr.bf16.mxu0 0
    %947 = vmatpush1.bf16.msra.mxu0 0
    %948 = vmatprep.subr.bf16.mxu0 0
    %949 = vmatpush1.bf16.msra.mxu0 0
    %950 = vmatprep.subr.bf16.mxu0 0
    %951 = vmatpush1.bf16.msra.mxu0 0
    %952 = vmatprep.subr.bf16.mxu0 0
    %953 = vmatpush1.bf16.msra.mxu0 0
    %954 = vmatprep.subr.bf16.mxu0 0
    %955 = vmatpush1.bf16.msra.mxu0 0
    %956 = vmatprep.subr.bf16.mxu0 0
    %957 = vmatpush1.bf16.msra.mxu0 0
    %958 = vmatprep.subr.bf16.mxu0 0
    %959 = vmatpush1.bf16.msra.mxu0 0
    %960 = vmatprep.mubr.bf16.mxu0 0
    %961 = vmatmul.mubr.bf16.gmra.mrb[0].mxu0 %v922
    %v962 = vpop.f32.mrb[0].mxu0
    %v963 = vadd.f32 0.0, %v962
    %v964 = vpop.f32.mrb[0].mxu0
    %v965 = vpop.f32.mrb[0].mxu0
    %v966 = vpop.f32.mrb[0].mxu0
    %967 = vdwg.mxu0
    %v969 = vsel %vm456, %v914, 0
    %v972 = vsel %vm924, %v441, 0
    %974 = vmatprep.subr.bf16.mxu0 0
    %975 = vmatpush1.bf16.msra.mxu0 %v972
    %976 = vmatprep.subr.bf16.mxu0 0
    %977 = vmatpush1.bf16.msra.mxu0 0
    %978 = vmatprep.subr.bf16.mxu0 0
    %979 = vmatpush1.bf16.msra.mxu0 0
    %980 = vmatprep.subr.bf16.mxu0 0
    %981 = vmatpush1.bf16.msra.mxu0 0
    %982 = vmatprep.subr.bf16.mxu0 0
    %983 = vmatpush1.bf16.msra.mxu0 0
    %984 = vmatprep.subr.bf16.mxu0 0
    %985 = vmatpush1.bf16.msra.mxu0 0
    %986 = vmatprep.subr.bf16.mxu0 0
    %987 = vmatpush1.bf16.msra.mxu0 0
    %988 = vmatprep.subr.bf16.mxu0 0
    %989 = vmatpush1.bf16.msra.mxu0 0
    %990 = vmatprep.subr.bf16.mxu0 0
    %991 = vmatpush1.bf16.msra.mxu0 0
    %992 = vmatprep.subr.bf16.mxu0 0
    %993 = vmatpush1.bf16.msra.mxu0 0
    %994 = vmatprep.subr.bf16.mxu0 0
    %995 = vmatpush1.bf16.msra.mxu0 0
    %996 = vmatprep.subr.bf16.mxu0 0
    %997 = vmatpush1.bf16.msra.mxu0 0
    %998 = vmatprep.subr.bf16.mxu0 0
    %999 = vmatpush1.bf16.msra.mxu0 0
    %1000 = vmatprep.subr.bf16.mxu0 0
    %1001 = vmatpush1.bf16.msra.mxu0 0
    %1002 = vmatprep.subr.bf16.mxu0 0
    %1003 = vmatpush1.bf16.msra.mxu0 0
    %1004 = vmatprep.subr.bf16.mxu0 0
    %1005 = vmatpush1.bf16.msra.mxu0 0
    %1006 = vmatprep.mubr.bf16.mxu0 0
    %1007 = vmatmul.mubr.bf16.gmra.mrb[0].mxu0 %v969
    %v1008 = vpop.f32.mrb[0].mxu0
    %v1009 = vadd.f32 0.0, %v1008
    %v1010 = vpop.f32.mrb[0].mxu0
    %v1011 = vpop.f32.mrb[0].mxu0
    %v1012 = vpop.f32.mrb[0].mxu0
    %1013 = vdwg.mxu0
    %v1015 = vsel %vm456, %v915, 0
    %v1018 = vsel %vm924, %v442, 0
    %1020 = vmatprep.subr.bf16.mxu0 0
    %1021 = vmatpush1.bf16.msra.mxu0 %v1018
    %1022 = vmatprep.subr.bf16.mxu0 0
    %1023 = vmatpush1.bf16.msra.mxu0 0
    %1024 = vmatprep.subr.bf16.mxu0 0
    %1025 = vmatpush1.bf16.msra.mxu0 0
    %1026 = vmatprep.subr.bf16.mxu0 0
    %1027 = vmatpush1.bf16.msra.mxu0 0
    %1028 = vmatprep.subr.bf16.mxu0 0
    %1029 = vmatpush1.bf16.msra.mxu0 0
    %1030 = vmatprep.subr.bf16.mxu0 0
    %1031 = vmatpush1.bf16.msra.mxu0 0
    %1032 = vmatprep.subr.bf16.mxu0 0
    %1033 = vmatpush1.bf16.msra.mxu0 0
    %1034 = vmatprep.subr.bf16.mxu0 0
    %1035 = vmatpush1.bf16.msra.mxu0 0
    %1036 = vmatprep.subr.bf16.mxu0 0
    %1037 = vmatpush1.bf16.msra.mxu0 0
    %1038 = vmatprep.subr.bf16.mxu0 0
    %1039 = vmatpush1.bf16.msra.mxu0 0
    %1040 = vmatprep.subr.bf16.mxu0 0
    %1041 = vmatpush1.bf16.msra.mxu0 0
    %1042 = vmatprep.subr.bf16.mxu0 0
    %1043 = vmatpush1.bf16.msra.mxu0 0
    %1044 = vmatprep.subr.bf16.mxu0 0
    %1045 = vmatpush1.bf16.msra.mxu0 0
    %1046 = vmatprep.subr.bf16.mxu0 0
    %1047 = vmatpush1.bf16.msra.mxu0 0
    %1048 = vmatprep.subr.bf16.mxu0 0
    %1049 = vmatpush1.bf16.msra.mxu0 0
    %1050 = vmatprep.subr.bf16.mxu0 0
    %1051 = vmatpush1.bf16.msra.mxu0 0
    %1052 = vmatprep.mubr.bf16.mxu0 0
    %1053 = vmatmul.mubr.bf16.gmra.mrb[0].mxu0 %v1015
    %v1054 = vpop.f32.mrb[0].mxu0
    %v1055 = vadd.f32 0.0, %v1054
    %v1056 = vpop.f32.mrb[0].mxu0
    %v1057 = vpop.f32.mrb[0].mxu0
    %v1058 = vpop.f32.mrb[0].mxu0
    %1059 = vdwg.mxu0
    %v1061 = vsel %vm456, %v916, 0
    %v1064 = vsel %vm924, %v443, 0
    %1066 = vmatprep.subr.bf16.mxu0 0
    %1067 = vmatpush1.bf16.msra.mxu0 %v1064
    %1068 = vmatprep.subr.bf16.mxu0 0
    %1069 = vmatpush1.bf16.msra.mxu0 0
    %1070 = vmatprep.subr.bf16.mxu0 0
    %1071 = vmatpush1.bf16.msra.mxu0 0
    %1072 = vmatprep.subr.bf16.mxu0 0
    %1073 = vmatpush1.bf16.msra.mxu0 0
    %1074 = vmatprep.subr.bf16.mxu0 0
    %1075 = vmatpush1.bf16.msra.mxu0 0
    %1076 = vmatprep.subr.bf16.mxu0 0
    %1077 = vmatpush1.bf16.msra.mxu0 0
    %1078 = vmatprep.subr.bf16.mxu0 0
    %1079 = vmatpush1.bf16.msra.mxu0 0
    %1080 = vmatprep.subr.bf16.mxu0 0
    %1081 = vmatpush1.bf16.msra.mxu0 0
    %1082 = vmatprep.subr.bf16.mxu0 0
    %1083 = vmatpush1.bf16.msra.mxu0 0
    %1084 = vmatprep.subr.bf16.mxu0 0
    %1085 = vmatpush1.bf16.msra.mxu0 0
    %1086 = vmatprep.subr.bf16.mxu0 0
    %1087 = vmatpush1.bf16.msra.mxu0 0
    %1088 = vmatprep.subr.bf16.mxu0 0
    %1089 = vmatpush1.bf16.msra.mxu0 0
    %1090 = vmatprep.subr.bf16.mxu0 0
    %1091 = vmatpush1.bf16.msra.mxu0 0
    %1092 = vmatprep.subr.bf16.mxu0 0
    %1093 = vmatpush1.bf16.msra.mxu0 0
    %1094 = vmatprep.subr.bf16.mxu0 0
    %1095 = vmatpush1.bf16.msra.mxu0 0
    %1096 = vmatprep.subr.bf16.mxu0 0
    %1097 = vmatpush1.bf16.msra.mxu0 0
    %1098 = vmatprep.mubr.bf16.mxu0 0
    %1099 = vmatmul.mubr.bf16.gmra.mrb[0].mxu0 %v1061
    %v1100 = vpop.f32.mrb[0].mxu0
    %v1101 = vadd.f32 0.0, %v1100
    %v1102 = vpop.f32.mrb[0].mxu0
    %v1103 = vpop.f32.mrb[0].mxu0
    %v1104 = vpop.f32.mrb[0].mxu0
    %1105 = vdwg.mxu0
    %v1107 = vsel %vm456, %v917, 0
    %v1110 = vsel %vm924, %v444, 0
    %1112 = vmatprep.subr.bf16.mxu0 0
    %1113 = vmatpush1.bf16.msra.mxu0 %v1110
    %1114 = vmatprep.subr.bf16.mxu0 0
    %1115 = vmatpush1.bf16.msra.mxu0 0
    %1116 = vmatprep.subr.bf16.mxu0 0
    %1117 = vmatpush1.bf16.msra.mxu0 0
    %1118 = vmatprep.subr.bf16.mxu0 0
    %1119 = vmatpush1.bf16.msra.mxu0 0
    %1120 = vmatprep.subr.bf16.mxu0 0
    %1121 = vmatpush1.bf16.msra.mxu0 0
    %1122 = vmatprep.subr.bf16.mxu0 0
    %1123 = vmatpush1.bf16.msra.mxu0 0
    %1124 = vmatprep.subr.bf16.mxu0 0
    %1125 = vmatpush1.bf16.msra.mxu0 0
    %1126 = vmatprep.subr.bf16.mxu0 0
    %1127 = vmatpush1.bf16.msra.mxu0 0
    %1128 = vmatprep.subr.bf16.mxu0 0
    %1129 = vmatpush1.bf16.msra.mxu0 0
    %1130 = vmatprep.subr.bf16.mxu0 0
    %1131 = vmatpush1.bf16.msra.mxu0 0
    %1132 = vmatprep.subr.bf16.mxu0 0
    %1133 = vmatpush1.bf16.msra.mxu0 0
    %1134 = vmatprep.subr.bf16.mxu0 0
    %1135 = vmatpush1.bf16.msra.mxu0 0
    %1136 = vmatprep.subr.bf16.mxu0 0
    %1137 = vmatpush1.bf16.msra.mxu0 0
    %1138 = vmatprep.subr.bf16.mxu0 0
    %1139 = vmatpush1.bf16.msra.mxu0 0
    %1140 = vmatprep.subr.bf16.mxu0 0
    %1141 = vmatpush1.bf16.msra.mxu0 0
    %1142 = vmatprep.subr.bf16.mxu0 0
    %1143 = vmatpush1.bf16.msra.mxu0 0
    %1144 = vmatprep.mubr.bf16.mxu0 0
    %1145 = vmatmul.mubr.bf16.gmra.mrb[0].mxu0 %v1107
    %v1146 = vpop.f32.mrb[0].mxu0
    %v1147 = vadd.f32 0.0, %v1146
    %v1148 = vpop.f32.mrb[0].mxu0
    %v1149 = vpop.f32.mrb[0].mxu0
    %v1150 = vpop.f32.mrb[0].mxu0
    %1151 = vdwg.mxu0
    %v1153 = vsel %vm456, %v918, 0
    %v1156 = vsel %vm924, %v445, 0
    %1158 = vmatprep.subr.bf16.mxu0 0
    %1159 = vmatpush1.bf16.msra.mxu0 %v1156
    %1160 = vmatprep.subr.bf16.mxu0 0
    %1161 = vmatpush1.bf16.msra.mxu0 0
    %1162 = vmatprep.subr.bf16.mxu0 0
    %1163 = vmatpush1.bf16.msra.mxu0 0
    %1164 = vmatprep.subr.bf16.mxu0 0
    %1165 = vmatpush1.bf16.msra.mxu0 0
    %1166 = vmatprep.subr.bf16.mxu0 0
    %1167 = vmatpush1.bf16.msra.mxu0 0
    %1168 = vmatprep.subr.bf16.mxu0 0
    %1169 = vmatpush1.bf16.msra.mxu0 0
    %1170 = vmatprep.subr.bf16.mxu0 0
    %1171 = vmatpush1.bf16.msra.mxu0 0
    %1172 = vmatprep.subr.bf16.mxu0 0
    %1173 = vmatpush1.bf16.msra.mxu0 0
    %1174 = vmatprep.subr.bf16.mxu0 0
    %1175 = vmatpush1.bf16.msra.mxu0 0
    %1176 = vmatprep.subr.bf16.mxu0 0
    %1177 = vmatpush1.bf16.msra.mxu0 0
    %1178 = vmatprep.subr.bf16.mxu0 0
    %1179 = vmatpush1.bf16.msra.mxu0 0
    %1180 = vmatprep.subr.bf16.mxu0 0
    %1181 = vmatpush1.bf16.msra.mxu0 0
    %1182 = vmatprep.subr.bf16.mxu0 0
    %1183 = vmatpush1.bf16.msra.mxu0 0
    %1184 = vmatprep.subr.bf16.mxu0 0
    %1185 = vmatpush1.bf16.msra.mxu0 0
    %1186 = vmatprep.subr.bf16.mxu0 0
    %1187 = vmatpush1.bf16.msra.mxu0 0
    %1188 = vmatprep.subr.bf16.mxu0 0
    %1189 = vmatpush1.bf16.msra.mxu0 0
    %1190 = vmatprep.mubr.bf16.mxu0 0
    %1191 = vmatmul.mubr.bf16.gmra.mrb[0].mxu0 %v1153
    %v1192 = vpop.f32.mrb[0].mxu0
    %v1193 = vadd.f32 0.0, %v1192
    %v1194 = vpop.f32.mrb[0].mxu0
    %v1195 = vpop.f32.mrb[0].mxu0
    %v1196 = vpop.f32.mrb[0].mxu0
    %1197 = vdwg.mxu0
    %v1199 = vsel %vm456, %v919, 0
    %v1202 = vsel %vm924, %v446, 0
    %1204 = vmatprep.subr.bf16.mxu0 0
    %1205 = vmatpush1.bf16.msra.mxu0 %v1202
    %1206 = vmatprep.subr.bf16.mxu0 0
    %1207 = vmatpush1.bf16.msra.mxu0 0
    %1208 = vmatprep.subr.bf16.mxu0 0
    %1209 = vmatpush1.bf16.msra.mxu0 0
    %1210 = vmatprep.subr.bf16.mxu0 0
    %1211 = vmatpush1.bf16.msra.mxu0 0
    %1212 = vmatprep.subr.bf16.mxu0 0
    %1213 = vmatpush1.bf16.msra.mxu0 0
    %1214 = vmatprep.subr.bf16.mxu0 0
    %1215 = vmatpush1.bf16.msra.mxu0 0
    %1216 = vmatprep.subr.bf16.mxu0 0
    %1217 = vmatpush1.bf16.msra.mxu0 0
    %1218 = vmatprep.subr.bf16.mxu0 0
    %1219 = vmatpush1.bf16.msra.mxu0 0
    %1220 = vmatprep.subr.bf16.mxu0 0
    %1221 = vmatpush1.bf16.msra.mxu0 0
    %1222 = vmatprep.subr.bf16.mxu0 0
    %1223 = vmatpush1.bf16.msra.mxu0 0
    %1224 = vmatprep.subr.bf16.mxu0 0
    %1225 = vmatpush1.bf16.msra.mxu0 0
    %1226 = vmatprep.subr.bf16.mxu0 0
    %1227 = vmatpush1.bf16.msra.mxu0 0
    %1228 = vmatprep.subr.bf16.mxu0 0
    %1229 = vmatpush1.bf16.msra.mxu0 0
    %1230 = vmatprep.subr.bf16.mxu0 0
    %1231 = vmatpush1.bf16.msra.mxu0 0
    %1232 = vmatprep.subr.bf16.mxu0 0
    %1233 = vmatpush1.bf16.msra.mxu0 0
    %1234 = vmatprep.subr.bf16.mxu0 0
    %1235 = vmatpush1.bf16.msra.mxu0 0
    %1236 = vmatprep.mubr.bf16.mxu0 0
    %1237 = vmatmul.mubr.bf16.gmra.mrb[0].mxu0 %v1199
    %v1238 = vpop.f32.mrb[0].mxu0
    %v1239 = vadd.f32 0.0, %v1238
    %v1240 = vpop.f32.mrb[0].mxu0
    %v1241 = vpop.f32.mrb[0].mxu0
    %v1242 = vpop.f32.mrb[0].mxu0
    %1243 = vdwg.mxu0
    %v1245 = vsel %vm456, %v920, 0
    %v1248 = vsel %vm924, %v447, 0
    %1250 = vmatprep.subr.bf16.mxu0 0
    %1251 = vmatpush1.bf16.msra.mxu0 %v1248
    %1252 = vmatprep.subr.bf16.mxu0 0
    %1253 = vmatpush1.bf16.msra.mxu0 0
    %1254 = vmatprep.subr.bf16.mxu0 0
    %1255 = vmatpush1.bf16.msra.mxu0 0
    %1256 = vmatprep.subr.bf16.mxu0 0
    %1257 = vmatpush1.bf16.msra.mxu0 0
    %1258 = vmatprep.subr.bf16.mxu0 0
    %1259 = vmatpush1.bf16.msra.mxu0 0
    %1260 = vmatprep.subr.bf16.mxu0 0
    %1261 = vmatpush1.bf16.msra.mxu0 0
    %1262 = vmatprep.subr.bf16.mxu0 0
    %1263 = vmatpush1.bf16.msra.mxu0 0
    %1264 = vmatprep.subr.bf16.mxu0 0
    %1265 = vmatpush1.bf16.msra.mxu0 0
    %1266 = vmatprep.subr.bf16.mxu0 0
    %1267 = vmatpush1.bf16.msra.mxu0 0
    %1268 = vmatprep.subr.bf16.mxu0 0
    %1269 = vmatpush1.bf16.msra.mxu0 0
    %1270 = vmatprep.subr.bf16.mxu0 0
    %1271 = vmatpush1.bf16.msra.mxu0 0
    %1272 = vmatprep.subr.bf16.mxu0 0
    %1273 = vmatpush1.bf16.msra.mxu0 0
    %1274 = vmatprep.subr.bf16.mxu0 0
    %1275 = vmatpush1.bf16.msra.mxu0 0
    %1276 = vmatprep.subr.bf16.mxu0 0
    %1277 = vmatpush1.bf16.msra.mxu0 0
    %1278 = vmatprep.subr.bf16.mxu0 0
    %1279 = vmatpush1.bf16.msra.mxu0 0
    %1280 = vmatprep.subr.bf16.mxu0 0
    %1281 = vmatpush1.bf16.msra.mxu0 0
    %1282 = vmatprep.mubr.bf16.mxu0 0
    %1283 = vmatmul.mubr.bf16.gmra.mrb[0].mxu0 %v1245
    %v1284 = vpop.f32.mrb[0].mxu0
    %v1285 = vadd.f32 0.0, %v1284
    %v1286 = vpop.f32.mrb[0].mxu0
    %v1287 = vpop.f32.mrb[0].mxu0
    %v1288 = vpop.f32.mrb[0].mxu0
    %1289 = vdwg.mxu0
    %v1290 = vld [vmem:[%s4] sm:$0xf]
    %v1291 = vld [vmem:[%s4 + $0x4] sm:$0xf]
    %v1292 = vld [vmem:[%s4 + $0x8] sm:$0xf]
    %v1293 = vld [vmem:[%s4 + $0xc] sm:$0xf]
    %v1294 = vpack.c.bf16 %v963, %v963
    %v1295 = vpack.c.bf16 %v1009, %v1009
    %v1296 = vpack.c.bf16 %v1055, %v1055
    %v1297 = vpack.c.bf16 %v1101, %v1101
    %v1298 = vpack.c.bf16 %v1147, %v1147
    %v1299 = vpack.c.bf16 %v1193, %v1193
    %v1300 = vpack.c.bf16 %v1239, %v1239
    %v1301 = vpack.c.bf16 %v1285, %v1285
    %v1303 = vsel %vm456, %v1294, 0
    %v1306 = vsel %vm924, %v1290, 0
    %1308 = vmatprep.subr.bf16.mxu0 0
    %1309 = vmatpush1.bf16.msra.mxu0 %v1306
    %1310 = vmatprep.subr.bf16.mxu0 0
    %1311 = vmatpush1.bf16.msra.mxu0 0
    %1312 = vmatprep.subr.bf16.mxu0 0
    %1313 = vmatpush1.bf16.msra.mxu0 0
    %1314 = vmatprep.subr.bf16.mxu0 0
    %1315 = vmatpush1.bf16.msra.mxu0 0
    %1316 = vmatprep.subr.bf16.mxu0 0
    %1317 = vmatpush1.bf16.msra.mxu0 0
    %1318 = vmatprep.subr.bf16.mxu0 0
    %1319 = vmatpush1.bf16.msra.mxu0 0
    %1320 = vmatprep.subr.bf16.mxu0 0
    %1321 = vmatpush1.bf16.msra.mxu0 0
    %1322 = vmatprep.subr.bf16.mxu0 0
    %1323 = vmatpush1.bf16.msra.mxu0 0
    %1324 = vmatprep.subr.bf16.mxu0 0
    %1325 = vmatpush1.bf16.msra.mxu0 0
    %1326 = vmatprep.subr.bf16.mxu0 0
    %1327 = vmatpush1.bf16.msra.mxu0 0
    %1328 = vmatprep.subr.bf16.mxu0 0
    %1329 = vmatpush1.bf16.msra.mxu0 0
    %1330 = vmatprep.subr.bf16.mxu0 0
    %1331 = vmatpush1.bf16.msra.mxu0 0
    %1332 = vmatprep.subr.bf16.mxu0 0
    %1333 = vmatpush1.bf16.msra.mxu0 0
    %1334 = vmatprep.subr.bf16.mxu0 0
    %1335 = vmatpush1.bf16.msra.mxu0 0
    %1336 = vmatprep.subr.bf16.mxu0 0
    %1337 = vmatpush1.bf16.msra.mxu0 0
    %1338 = vmatprep.subr.bf16.mxu0 0
    %1339 = vmatpush1.bf16.msra.mxu0 0
    %1340 = vmatprep.mubr.bf16.mxu0 0
    %1341 = vmatmul.mubr.bf16.gmra.mrb[0].mxu0 %v1303
    %v1342 = vpop.f32.mrb[0].mxu0
    %v1343 = vadd.f32 0.0, %v1342
    %v1344 = vpop.f32.mrb[0].mxu0
    %v1345 = vpop.f32.mrb[0].mxu0
    %v1346 = vpop.f32.mrb[0].mxu0
    %1347 = vdwg.mxu0
    %v1349 = vsel %vm456, %v1295, 0
    %v1352 = vsel %vm924, %v1291, 0
    %1354 = vmatprep.subr.bf16.mxu0 0
    %1355 = vmatpush1.bf16.msra.mxu0 %v1352
    %1356 = vmatprep.subr.bf16.mxu0 0
    %1357 = vmatpush1.bf16.msra.mxu0 0
    %1358 = vmatprep.subr.bf16.mxu0 0
    %1359 = vmatpush1.bf16.msra.mxu0 0
    %1360 = vmatprep.subr.bf16.mxu0 0
    %1361 = vmatpush1.bf16.msra.mxu0 0
    %1362 = vmatprep.subr.bf16.mxu0 0
    %1363 = vmatpush1.bf16.msra.mxu0 0
    %1364 = vmatprep.subr.bf16.mxu0 0
    %1365 = vmatpush1.bf16.msra.mxu0 0
    %1366 = vmatprep.subr.bf16.mxu0 0
    %1367 = vmatpush1.bf16.msra.mxu0 0
    %1368 = vmatprep.subr.bf16.mxu0 0
    %1369 = vmatpush1.bf16.msra.mxu0 0
    %1370 = vmatprep.subr.bf16.mxu0 0
    %1371 = vmatpush1.bf16.msra.mxu0 0
    %1372 = vmatprep.subr.bf16.mxu0 0
    %1373 = vmatpush1.bf16.msra.mxu0 0
    %1374 = vmatprep.subr.bf16.mxu0 0
    %1375 = vmatpush1.bf16.msra.mxu0 0
    %1376 = vmatprep.subr.bf16.mxu0 0
    %1377 = vmatpush1.bf16.msra.mxu0 0
    %1378 = vmatprep.subr.bf16.mxu0 0
    %1379 = vmatpush1.bf16.msra.mxu0 0
    %1380 = vmatprep.subr.bf16.mxu0 0
    %1381 = vmatpush1.bf16.msra.mxu0 0
    %1382 = vmatprep.subr.bf16.mxu0 0
    %1383 = vmatpush1.bf16.msra.mxu0 0
    %1384 = vmatprep.subr.bf16.mxu0 0
    %1385 = vmatpush1.bf16.msra.mxu0 0
    %1386 = vmatprep.mubr.bf16.mxu0 0
    %1387 = vmatmul.mubr.bf16.gmra.mrb[0].mxu0 %v1349
    %v1388 = vpop.f32.mrb[0].mxu0
    %v1389 = vadd.f32 0.0, %v1388
    %v1390 = vpop.f32.mrb[0].mxu0
    %v1391 = vpop.f32.mrb[0].mxu0
    %v1392 = vpop.f32.mrb[0].mxu0
    %1393 = vdwg.mxu0
    %v1395 = vsel %vm456, %v1296, 0
    %v1398 = vsel %vm924, %v1292, 0
    %1400 = vmatprep.subr.bf16.mxu0 0
    %1401 = vmatpush1.bf16.msra.mxu0 %v1398
    %1402 = vmatprep.subr.bf16.mxu0 0
    %1403 = vmatpush1.bf16.msra.mxu0 0
    %1404 = vmatprep.subr.bf16.mxu0 0
    %1405 = vmatpush1.bf16.msra.mxu0 0
    %1406 = vmatprep.subr.bf16.mxu0 0
    %1407 = vmatpush1.bf16.msra.mxu0 0
    %1408 = vmatprep.subr.bf16.mxu0 0
    %1409 = vmatpush1.bf16.msra.mxu0 0
    %1410 = vmatprep.subr.bf16.mxu0 0
    %1411 = vmatpush1.bf16.msra.mxu0 0
    %1412 = vmatprep.subr.bf16.mxu0 0
    %1413 = vmatpush1.bf16.msra.mxu0 0
    %1414 = vmatprep.subr.bf16.mxu0 0
    %1415 = vmatpush1.bf16.msra.mxu0 0
    %1416 = vmatprep.subr.bf16.mxu0 0
    %1417 = vmatpush1.bf16.msra.mxu0 0
    %1418 = vmatprep.subr.bf16.mxu0 0
    %1419 = vmatpush1.bf16.msra.mxu0 0
    %1420 = vmatprep.subr.bf16.mxu0 0
    %1421 = vmatpush1.bf16.msra.mxu0 0
    %1422 = vmatprep.subr.bf16.mxu0 0
    %1423 = vmatpush1.bf16.msra.mxu0 0
    %1424 = vmatprep.subr.bf16.mxu0 0
    %1425 = vmatpush1.bf16.msra.mxu0 0
    %1426 = vmatprep.subr.bf16.mxu0 0
    %1427 = vmatpush1.bf16.msra.mxu0 0
    %1428 = vmatprep.subr.bf16.mxu0 0
    %1429 = vmatpush1.bf16.msra.mxu0 0
    %1430 = vmatprep.subr.bf16.mxu0 0
    %1431 = vmatpush1.bf16.msra.mxu0 0
    %1432 = vmatprep.mubr.bf16.mxu0 0
    %1433 = vmatmul.mubr.bf16.gmra.mrb[0].mxu0 %v1395
    %v1434 = vpop.f32.mrb[0].mxu0
    %v1435 = vadd.f32 0.0, %v1434
    %v1436 = vpop.f32.mrb[0].mxu0
    %v1437 = vpop.f32.mrb[0].mxu0
    %v1438 = vpop.f32.mrb[0].mxu0
    %1439 = vdwg.mxu0
    %v1441 = vsel %vm456, %v1297, 0
    %v1444 = vsel %vm924, %v1293, 0
    %1446 = vmatprep.subr.bf16.mxu0 0
    %1447 = vmatpush1.bf16.msra.mxu0 %v1444
    %1448 = vmatprep.subr.bf16.mxu0 0
    %1449 = vmatpush1.bf16.msra.mxu0 0
    %1450 = vmatprep.subr.bf16.mxu0 0
    %1451 = vmatpush1.bf16.msra.mxu0 0
    %1452 = vmatprep.subr.bf16.mxu0 0
    %1453 = vmatpush1.bf16.msra.mxu0 0
    %1454 = vmatprep.subr.bf16.mxu0 0
    %1455 = vmatpush1.bf16.msra.mxu0 0
    %1456 = vmatprep.subr.bf16.mxu0 0
    %1457 = vmatpush1.bf16.msra.mxu0 0
    %1458 = vmatprep.subr.bf16.mxu0 0
    %1459 = vmatpush1.bf16.msra.mxu0 0
    %1460 = vmatprep.subr.bf16.mxu0 0
    %1461 = vmatpush1.bf16.msra.mxu0 0
    %1462 = vmatprep.subr.bf16.mxu0 0
    %1463 = vmatpush1.bf16.msra.mxu0 0
    %1464 = vmatprep.subr.bf16.mxu0 0
    %1465 = vmatpush1.bf16.msra.mxu0 0
    %1466 = vmatprep.subr.bf16.mxu0 0
    %1467 = vmatpush1.bf16.msra.mxu0 0
    %1468 = vmatprep.subr.bf16.mxu0 0
    %1469 = vmatpush1.bf16.msra.mxu0 0
    %1470 = vmatprep.subr.bf16.mxu0 0
    %1471 = vmatpush1.bf16.msra.mxu0 0
    %1472 = vmatprep.subr.bf16.mxu0 0
    %1473 = vmatpush1.bf16.msra.mxu0 0
    %1474 = vmatprep.subr.bf16.mxu0 0
    %1475 = vmatpush1.bf16.msra.mxu0 0
    %1476 = vmatprep.subr.bf16.mxu0 0
    %1477 = vmatpush1.bf16.msra.mxu0 0
    %1478 = vmatprep.mubr.bf16.mxu0 0
    %1479 = vmatmul.mubr.bf16.gmra.mrb[0].mxu0 %v1441
    %v1480 = vpop.f32.mrb[0].mxu0
    %v1481 = vadd.f32 0.0, %v1480
    %v1482 = vpop.f32.mrb[0].mxu0
    %v1483 = vpop.f32.mrb[0].mxu0
    %v1484 = vpop.f32.mrb[0].mxu0
    %1485 = vdwg.mxu0
    %v1487 = vsel %vm456, %v1298, 0
    %1489 = vmatprep.subr.bf16.mxu0 0
    %1490 = vmatpush1.bf16.msra.mxu0 %v1306
    %1491 = vmatprep.subr.bf16.mxu0 0
    %1492 = vmatpush1.bf16.msra.mxu0 0
    %1493 = vmatprep.subr.bf16.mxu0 0
    %1494 = vmatpush1.bf16.msra.mxu0 0
    %1495 = vmatprep.subr.bf16.mxu0 0
    %1496 = vmatpush1.bf16.msra.mxu0 0
    %1497 = vmatprep.subr.bf16.mxu0 0
    %1498 = vmatpush1.bf16.msra.mxu0 0
    %1499 = vmatprep.subr.bf16.mxu0 0
    %1500 = vmatpush1.bf16.msra.mxu0 0
    %1501 = vmatprep.subr.bf16.mxu0 0
    %1502 = vmatpush1.bf16.msra.mxu0 0
    %1503 = vmatprep.subr.bf16.mxu0 0
    %1504 = vmatpush1.bf16.msra.mxu0 0
    %1505 = vmatprep.subr.bf16.mxu0 0
    %1506 = vmatpush1.bf16.msra.mxu0 0
    %1507 = vmatprep.subr.bf16.mxu0 0
    %1508 = vmatpush1.bf16.msra.mxu0 0
    %1509 = vmatprep.subr.bf16.mxu0 0
    %1510 = vmatpush1.bf16.msra.mxu0 0
    %1511 = vmatprep.subr.bf16.mxu0 0
    %1512 = vmatpush1.bf16.msra.mxu0 0
    %1513 = vmatprep.subr.bf16.mxu0 0
    %1514 = vmatpush1.bf16.msra.mxu0 0
    %1515 = vmatprep.subr.bf16.mxu0 0
    %1516 = vmatpush1.bf16.msra.mxu0 0
    %1517 = vmatprep.subr.bf16.mxu0 0
    %1518 = vmatpush1.bf16.msra.mxu0 0
    %1519 = vmatprep.subr.bf16.mxu0 0
    %1520 = vmatpush1.bf16.msra.mxu0 0
    %1521 = vmatprep.mubr.bf16.mxu0 0
    %1522 = vmatmul.mubr.bf16.gmra.mrb[0].mxu0 %v1487
    %v1523 = vpop.f32.mrb[0].mxu0
    %v1524 = vadd.f32 0.0, %v1523
    %v1525 = vpop.f32.mrb[0].mxu0
    %v1526 = vpop.f32.mrb[0].mxu0
    %v1527 = vpop.f32.mrb[0].mxu0
    %1528 = vdwg.mxu0
    %v1530 = vsel %vm456, %v1299, 0
    %1532 = vmatprep.subr.bf16.mxu0 0
    %1533 = vmatpush1.bf16.msra.mxu0 %v1352
    %1534 = vmatprep.subr.bf16.mxu0 0
    %1535 = vmatpush1.bf16.msra.mxu0 0
    %1536 = vmatprep.subr.bf16.mxu0 0
    %1537 = vmatpush1.bf16.msra.mxu0 0
    %1538 = vmatprep.subr.bf16.mxu0 0
    %1539 = vmatpush1.bf16.msra.mxu0 0
    %1540 = vmatprep.subr.bf16.mxu0 0
    %1541 = vmatpush1.bf16.msra.mxu0 0
    %1542 = vmatprep.subr.bf16.mxu0 0
    %1543 = vmatpush1.bf16.msra.mxu0 0
    %1544 = vmatprep.subr.bf16.mxu0 0
    %1545 = vmatpush1.bf16.msra.mxu0 0
    %1546 = vmatprep.subr.bf16.mxu0 0
    %1547 = vmatpush1.bf16.msra.mxu0 0
    %1548 = vmatprep.subr.bf16.mxu0 0
    %1549 = vmatpush1.bf16.msra.mxu0 0
    %1550 = vmatprep.subr.bf16.mxu0 0
    %1551 = vmatpush1.bf16.msra.mxu0 0
    %1552 = vmatprep.subr.bf16.mxu0 0
    %1553 = vmatpush1.bf16.msra.mxu0 0
    %1554 = vmatprep.subr.bf16.mxu0 0
    %1555 = vmatpush1.bf16.msra.mxu0 0
    %1556 = vmatprep.subr.bf16.mxu0 0
    %1557 = vmatpush1.bf16.msra.mxu0 0
    %1558 = vmatprep.subr.bf16.mxu0 0
    %1559 = vmatpush1.bf16.msra.mxu0 0
    %1560 = vmatprep.subr.bf16.mxu0 0
    %1561 = vmatpush1.bf16.msra.mxu0 0
    %1562 = vmatprep.subr.bf16.mxu0 0
    %1563 = vmatpush1.bf16.msra.mxu0 0
    %1564 = vmatprep.mubr.bf16.mxu0 0
    %1565 = vmatmul.mubr.bf16.gmra.mrb[0].mxu0 %v1530
    %v1566 = vpop.f32.mrb[0].mxu0
    %v1567 = vadd.f32 0.0, %v1566
    %v1568 = vpop.f32.mrb[0].mxu0
    %v1569 = vpop.f32.mrb[0].mxu0
    %v1570 = vpop.f32.mrb[0].mxu0
    %1571 = vdwg.mxu0
    %v1573 = vsel %vm456, %v1300, 0
    %1575 = vmatprep.subr.bf16.mxu0 0
    %1576 = vmatpush1.bf16.msra.mxu0 %v1398
    %1577 = vmatprep.subr.bf16.mxu0 0
    %1578 = vmatpush1.bf16.msra.mxu0 0
    %1579 = vmatprep.subr.bf16.mxu0 0
    %1580 = vmatpush1.bf16.msra.mxu0 0
    %1581 = vmatprep.subr.bf16.mxu0 0
    %1582 = vmatpush1.bf16.msra.mxu0 0
    %1583 = vmatprep.subr.bf16.mxu0 0
    %1584 = vmatpush1.bf16.msra.mxu0 0
    %1585 = vmatprep.subr.bf16.mxu0 0
    %1586 = vmatpush1.bf16.msra.mxu0 0
    %1587 = vmatprep.subr.bf16.mxu0 0
    %1588 = vmatpush1.bf16.msra.mxu0 0
    %1589 = vmatprep.subr.bf16.mxu0 0
    %1590 = vmatpush1.bf16.msra.mxu0 0
    %1591 = vmatprep.subr.bf16.mxu0 0
    %1592 = vmatpush1.bf16.msra.mxu0 0
    %1593 = vmatprep.subr.bf16.mxu0 0
    %1594 = vmatpush1.bf16.msra.mxu0 0
    %1595 = vmatprep.subr.bf16.mxu0 0
    %1596 = vmatpush1.bf16.msra.mxu0 0
    %1597 = vmatprep.subr.bf16.mxu0 0
    %1598 = vmatpush1.bf16.msra.mxu0 0
    %1599 = vmatprep.subr.bf16.mxu0 0
    %1600 = vmatpush1.bf16.msra.mxu0 0
    %1601 = vmatprep.subr.bf16.mxu0 0
    %1602 = vmatpush1.bf16.msra.mxu0 0
    %1603 = vmatprep.subr.bf16.mxu0 0
    %1604 = vmatpush1.bf16.msra.mxu0 0
    %1605 = vmatprep.subr.bf16.mxu0 0
    %1606 = vmatpush1.bf16.msra.mxu0 0
    %1607 = vmatprep.mubr.bf16.mxu0 0
    %1608 = vmatmul.mubr.bf16.gmra.mrb[0].mxu0 %v1573
    %v1609 = vpop.f32.mrb[0].mxu0
    %v1610 = vadd.f32 0.0, %v1609
    %v1611 = vpop.f32.mrb[0].mxu0
    %v1612 = vpop.f32.mrb[0].mxu0
    %v1613 = vpop.f32.mrb[0].mxu0
    %1614 = vdwg.mxu0
    %v1616 = vsel %vm456, %v1301, 0
    %1618 = vmatprep.subr.bf16.mxu0 0
    %1619 = vmatpush1.bf16.msra.mxu0 %v1444
    %1620 = vmatprep.subr.bf16.mxu0 0
    %1621 = vmatpush1.bf16.msra.mxu0 0
    %1622 = vmatprep.subr.bf16.mxu0 0
    %1623 = vmatpush1.bf16.msra.mxu0 0
    %1624 = vmatprep.subr.bf16.mxu0 0
    %1625 = vmatpush1.bf16.msra.mxu0 0
    %1626 = vmatprep.subr.bf16.mxu0 0
    %1627 = vmatpush1.bf16.msra.mxu0 0
    %1628 = vmatprep.subr.bf16.mxu0 0
    %1629 = vmatpush1.bf16.msra.mxu0 0
    %1630 = vmatprep.subr.bf16.mxu0 0
    %1631 = vmatpush1.bf16.msra.mxu0 0
    %1632 = vmatprep.subr.bf16.mxu0 0
    %1633 = vmatpush1.bf16.msra.mxu0 0
    %1634 = vmatprep.subr.bf16.mxu0 0
    %1635 = vmatpush1.bf16.msra.mxu0 0
    %1636 = vmatprep.subr.bf16.mxu0 0
    %1637 = vmatpush1.bf16.msra.mxu0 0
    %1638 = vmatprep.subr.bf16.mxu0 0
    %1639 = vmatpush1.bf16.msra.mxu0 0
    %1640 = vmatprep.subr.bf16.mxu0 0
    %1641 = vmatpush1.bf16.msra.mxu0 0
    %1642 = vmatprep.subr.bf16.mxu0 0
    %1643 = vmatpush1.bf16.msra.mxu0 0
    %1644 = vmatprep.subr.bf16.mxu0 0
    %1645 = vmatpush1.bf16.msra.mxu0 0
    %1646 = vmatprep.subr.bf16.mxu0 0
    %1647 = vmatpush1.bf16.msra.mxu0 0
    %1648 = vmatprep.subr.bf16.mxu0 0
    %1649 = vmatpush1.bf16.msra.mxu0 0
    %1650 = vmatprep.mubr.bf16.mxu0 0
    %1651 = vmatmul.mubr.bf16.gmra.mrb[0].mxu0 %v1616
    %v1652 = vpop.f32.mrb[0].mxu0
    %v1653 = vadd.f32 0.0, %v1652
    %v1654 = vpop.f32.mrb[0].mxu0
    %v1655 = vpop.f32.mrb[0].mxu0
    %v1656 = vpop.f32.mrb[0].mxu0
    %1657 = vdwg.mxu0
    %v1658 = vsel %vm69, %v1343, 0.0
    %v1659 = vsel %vm69, %v1389, 0.0
    %v1660 = vadd.f32 %v1658, %v1659
    %v1661 = vsel %vm69, %v1435, 0.0
    %v1662 = vadd.f32 %v1660, %v1661
    %v1663 = vsel %vm69, %v1481, 0.0
    %v1664 = vadd.f32 %v1662, %v1663
    %v1665 = vsel %vm69, %v1524, 0.0
    %v1666 = vsel %vm69, %v1567, 0.0
    %v1667 = vadd.f32 %v1665, %v1666
    %v1668 = vsel %vm69, %v1610, 0.0
    %v1669 = vadd.f32 %v1667, %v1668
    %v1670 = vsel %vm69, %v1653, 0.0
    %v1671 = vadd.f32 %v1669, %v1670
    %v1672 = vld [vmem:[%s5] sm:$0x1]
    %v1674 = vlaneseq
    %v1675 = vshrl.u32 %v1674, 7
    %v1676 = vsub.s32 0, %v1675
    %v1677 = vrot.slane %v1672, %v1676
    %v1679 = vadd.f32 %v1664, %v1677
    %v1680 = vadd.f32 %v1671, %v1677
    %1681 = vst.msk [vmem:[#allocation5] sm:$0xff] %vm69, %v1679
    %1682 = vst.msk [vmem:[#allocation5 + $0x8] sm:$0xff] %vm69, %v1680
    // Predicated region
    $region30: #{tpu_custom_call.1} parent=1 // pred_check
      _
    $region31: #{tpu_custom_call.1} parent=1 // pred_check_branch
      %1684 = sbr.rel (0) target = $region33
    $region32: #{tpu_custom_call.1} parent=1 // pred_region
      %s1686 = ssub.s32 256, 256
      %1687 = vsyncadd [#allocation4], %s1686
      %s1688 = sshll.u32 [#allocation5], 4
      %s1689 = int_to_ptr.vmem [resolvable:$true] %s1688
      %1694 = dma.vmem_to_hbm [thread:$0]  %s1689, 256, %s6, [#allocation4], 128, 128, 8
    $region33: #{tpu_custom_call.1} parent=1 // pred_fallthru
      _
    // Predicated region
    $region34: #{tpu_custom_call.1} parent=1 // pred_check
      _
    $region35: #{tpu_custom_call.1} parent=1 // pred_check_branch
      %1696 = sbr.rel (0) target = $region37
    $region36: #{tpu_custom_call.1} parent=1 // pred_region
      %1697 = dma.done [#allocation4], 256
    $region37: #{tpu_custom_call.1} parent=1 // pred_fallthru
      _
    %1698 = vsyncpa [#allocation3], 1
    %1699 = vsyncpa [#allocation4], 1

</llo_original>
